<compile_context>
chip_gen: v5e
topology: v5e:2x2
jax: 0.10.0
libtpu: 0.0.40
codegen_flags: <defaults>
</compile_context>

<pallas_src>
import math

import jax
import jax.numpy as jnp
from jax import lax
from jax.experimental import pallas as pl
from jax.experimental.pallas import tpu as pltpu

CLIP_EPS = 0.2
LOG_SIG_MAX = 2.0
LOG_SIG_MIN = -20.0
EPS_STD = 1e-6                      # `epsilon` in the PyTorch module
EPS_ADV = 1e-8                      # reward-normalization epsilon
LN_EPS = 1e-5                       # nn.LayerNorm default eps
_LOG_EPS_STD = math.log(EPS_STD)
_HALF_LOG_2PI = 0.5 * math.log(2.0 * math.pi)


def grpo_policy_loss(obs, act, old_lp, rewards, params, *,
                     tile_rows=512, use_bf16=True):
    """Fused GRPOPolicy.forward (mean, std) + GRPO clipped-surrogate loss."""
    N, D = obs.shape
    A = act.shape[1]
    G, T = rewards.shape
    H = params["w1"].shape[1]
    assert N == G * T, "obs rows must be num_traj * timesteps"

    tile_rows = min(tile_rows, N)
    assert tile_rows % 8 == 0 and N % tile_rows == 0, \
        "tile_rows must be a multiple of 8 and divide N"
    nt = N // tile_rows

    # ---------------- wrapper-side prep (tiny, pure XLA) ----------------
    # Advantages: normalize rewards (unbiased std, as torch.Tensor.std()) and
    # reverse-cumsum along time; fed per-row so tiles need no trajectory alignment.
    r = rewards.astype(jnp.float32)
    std_r = r.std(ddof=1) + EPS_ADV
    norm_r = (r - r.mean()) / std_r
    adv_col = jnp.flip(jnp.cumsum(jnp.flip(norm_r, axis=1), axis=1),
                       axis=1).reshape(N, 1)

    old_col = old_lp.reshape(N, 1).astype(jnp.float32)

    # merged heads: [H, 2A] / [1, 2A]  -> one MXU matmul instead of two
    w_heads = jnp.concatenate([params["wmu"], params["wsig"]], axis=1)
    b_heads = jnp.concatenate([params["bmu"], params["bsig"]], axis=1).astype(jnp.float32)

    # bf16 MATMUL operands only (halves the dominant HBM stream, 2x MXU rate);
    # biases / LayerNorm params / per-row scalars stay f32 (no bf16 VPU on v5e).
    mm_dtype = jnp.bfloat16 if use_bf16 else jnp.float32
    obs_mm = obs.astype(mm_dtype)
    w1 = params["w1"].astype(mm_dtype)
    w_heads = w_heads.astype(mm_dtype)
    b1 = params["b1"].astype(jnp.float32)
    ln_g = params["ln_g"].astype(jnp.float32)
    ln_b = params["ln_b"].astype(jnp.float32)
    act_f32 = act.astype(jnp.float32)

    def kernel(obs_ref, act_ref, old_ref, adv_ref,
               w1_ref, b1_ref, g_ref, bln_ref, wh_ref, bh_ref,
               ms_ref, loss_ref):
        pid = pl.program_id(0)

        # ---- init resident scalar-loss accumulator ----
        @pl.when(pid == 0)
        def _init():
            loss_ref[...] = jnp.zeros_like(loss_ref)

        # ---- GRPOPolicy.forward: Linear -> LayerNorm -> ReLU -> fused heads ----
        h_pre = jnp.dot(obs_ref[...], w1_ref[...],
                        preferred_element_type=jnp.float32) + b1_ref[...]   # [TN, H] f32
        mu_h = jnp.mean(h_pre, axis=-1, keepdims=True)
        var_h = jnp.mean((h_pre - mu_h) ** 2, axis=-1, keepdims=True)
        h_hat = (h_pre - mu_h) * lax.rsqrt(var_h + LN_EPS)
        h = jnp.maximum(h_hat * g_ref[...] + bln_ref[...], 0.0)            # ReLU, f32

        heads = jnp.dot(h.astype(wh_ref.dtype), wh_ref[...],
                        preferred_element_type=jnp.float32) + bh_ref[...]  # [TN, 2A] f32
        a_dim = act_ref.shape[-1]
        mean_a = heads[:, :a_dim]                                          # [TN, A]
        log_std = jnp.clip(heads[:, a_dim:], LOG_SIG_MIN, LOG_SIG_MAX)     # [TN, A]
        std_a = jnp.exp(log_std)

        # module forward outputs as one merged lane-contiguous slab [mean | std]
        ms_ref[:, :a_dim] = mean_a.astype(ms_ref.dtype)
        ms_ref[:, a_dim:] = std_a.astype(ms_ref.dtype)

        # ---- Normal log-prob of taken actions (std.clamp(min=eps) in log space) ----
        log_std_eff = jnp.maximum(log_std, _LOG_EPS_STD)
        inv_sig = jnp.exp(-log_std_eff)                      # one EUP exp; no log/divide
        z = (act_ref[...] - mean_a) * inv_sig
        logp = -0.5 * z * z - log_std_eff - _HALF_LOG_2PI    # [TN, A]
        new_lp = jnp.sum(logp, axis=-1, keepdims=True)       # [TN, 1]

        # ---- PPO/GRPO clipped surrogate, accumulate partial sum ----
        adv = adv_ref[...]                                    # [TN, 1] (precomputed)
        ratio = jnp.exp(new_lp - old_ref[...])
        clipped = jnp.clip(ratio, 1.0 - CLIP_EPS, 1.0 + CLIP_EPS)
        surr = jnp.minimum(ratio * adv, clipped * adv)        # [TN, 1]
        loss_ref[...] += jnp.sum(surr, keepdims=True)         # (1, 1)

        # ---- finalize: loss = -mean(surr) over all N rows ----
        @pl.when(pid == pl.num_programs(0) - 1)
        def _finalize():
            loss_ref[...] = loss_ref[...] * (-1.0 / float(N))

    # advisory cost estimate for XLA scheduling around the custom call
    flops = int(2 * N * D * H + 2 * N * H * 2 * A + 20 * N * (H + A))
    transcendentals = int(N * (2 * A + 2))
    itemsize = 2 if use_bf16 else 4
    bytes_accessed = int(itemsize * (N * D + D * H + 2 * A * H)
                         + 4 * (N * (A + 2 * A + 2) + 3 * H + 2 * A + 1))

    const = lambda i: (0, 0)   # resident (never re-fetched) blocks
    ms_out, loss_out = pl.pallas_call(
        kernel,
        out_shape=(
            jax.ShapeDtypeStruct((N, 2 * A), jnp.float32),   # [mean | std] slab
            jax.ShapeDtypeStruct((1, 1), jnp.float32),       # GRPO loss
        ),
        grid=(nt,),
        in_specs=[
            pl.BlockSpec((tile_rows, D), lambda i: (i, 0)),      # obs tile (mm dtype)
            pl.BlockSpec((tile_rows, A), lambda i: (i, 0)),      # actions tile (f32)
            pl.BlockSpec((tile_rows, 1), lambda i: (i, 0)),      # old log-prob tile
            pl.BlockSpec((tile_rows, 1), lambda i: (i, 0)),      # precomputed adv tile
            pl.BlockSpec((D, H), const),                         # w1
            pl.BlockSpec((1, H), const),                         # b1
            pl.BlockSpec((1, H), const),                         # LayerNorm gamma
            pl.BlockSpec((1, H), const),                         # LayerNorm beta
            pl.BlockSpec((H, 2 * A), const),                     # [wmu | wsig]
            pl.BlockSpec((1, 2 * A), const),                     # [bmu | bsig]
        ],
        out_specs=(
            pl.BlockSpec((tile_rows, 2 * A), lambda i: (i, 0)),
            pl.BlockSpec((1, 1), const),                         # resident accumulator
        ),
        compiler_params=pltpu.CompilerParams(
            dimension_semantics=("arbitrary",),                  # carries the accumulator
            vmem_limit_bytes=48 * 1024 * 1024,                   # fits v7x 64 MiB VMEM
        ),
        cost_estimate=pl.CostEstimate(flops=flops,
                                      transcendentals=transcendentals,
                                      bytes_accessed=bytes_accessed),
    )(obs_mm, act_f32, old_col, adv_col, w1, b1, ln_g, ln_b, w_heads, b_heads)

    mean = ms_out[:, :A]
    std = ms_out[:, A:]
    return mean, std, loss_out[0, 0]


# ----------------------------------------------------------------------------
# Pure-JAX reference (mirrors the PyTorch module) for correctness checks.
# ----------------------------------------------------------------------------
def ref_policy_forward(obs, params):
    h_pre = obs @ params["w1"] + params["b1"]
    mu = h_pre.mean(-1, keepdims=True)
    var = ((h_pre - mu) ** 2).mean(-1, keepdims=True)
    h = jnp.maximum((h_pre - mu) / jnp.sqrt(var + LN_EPS) * params["ln_g"]
                    + params["ln_b"], 0.0)
    mean = h @ params["wmu"] + params["bmu"]
    log_std = jnp.clip(h @ params["wsig"] + params["bsig"], LOG_SIG_MIN, LOG_SIG_MAX)
    return mean, jnp.exp(log_std)


def ref_log_prob(obs, act, params):
    mean, std = ref_policy_forward(obs, params)
    sig = jnp.maximum(std, EPS_STD)
    logp = -0.5 * ((act - mean) / sig) ** 2 - jnp.log(sig) - _HALF_LOG_2PI
    return logp.sum(-1)


def ref_grpo_loss(obs, act, old_lp, rewards, params):
    std_r = rewards.std(ddof=1) + EPS_ADV          # unbiased, as torch.Tensor.std()
    norm = (rewards - rewards.mean()) / std_r
    adv = jnp.flip(jnp.cumsum(jnp.flip(norm, axis=1), axis=1), axis=1).reshape(-1)
    new_lp = ref_log_prob(obs, act, params)
    ratio = jnp.exp(new_lp - old_lp)
    clipped = jnp.clip(ratio, 1.0 - CLIP_EPS, 1.0 + CLIP_EPS)
    return -jnp.minimum(ratio * adv, clipped * adv).mean()


if __name__ == "__main__":
    # num_traj, timesteps, obs_dim, act_dim, hidden
    G, T, D, A, H = 16, 16, 16, 4, 32
    N = G * T

    key = jax.random.PRNGKey(0)
    ks = jax.random.split(key, 9)

    obs = jax.random.normal(ks[0], (N, D), dtype=jnp.float32)
    act = jax.random.normal(ks[1], (N, A), dtype=jnp.float32)
    rewards = jax.random.normal(ks[2], (G, T), dtype=jnp.float32)

    params = {
        "w1":   0.3 * jax.random.normal(ks[3], (D, H), dtype=jnp.float32),
        "b1":   jnp.zeros((1, H), dtype=jnp.float32),
        "ln_g": jnp.ones((1, H), dtype=jnp.float32)
                + 0.1 * jax.random.normal(ks[4], (1, H), dtype=jnp.float32),
        "ln_b": 0.1 * jax.random.normal(ks[5], (1, H), dtype=jnp.float32),
        "wmu":  0.3 * jax.random.normal(ks[6], (H, A), dtype=jnp.float32),
        "bmu":  jnp.zeros((1, A), dtype=jnp.float32),
        "wsig": 0.1 * jax.random.normal(ks[7], (H, A), dtype=jnp.float32),
        "bsig": jnp.full((1, A), -0.5, dtype=jnp.float32),
    }

    # "old" log-probs: current policy's log-probs plus a small perturbation
    old_lp = ref_log_prob(obs, act, params) \
        + 0.05 * jax.random.normal(ks[8], (N,), dtype=jnp.float32)

    # --- reference ---
    mean_r, std_r = ref_policy_forward(obs, params)
    loss_r = jax.block_until_ready(ref_grpo_loss(obs, act, old_lp, rewards, params))

    # --- f32 kernel, 2 grid steps (exercises pipelining + the resident accumulator) ---
    mean_k, std_k, loss_k = grpo_policy_loss(obs, act, old_lp, rewards, params,
                                             tile_rows=128, use_bf16=False)
    (mean_k, std_k, loss_k) = jax.block_until_ready((mean_k, std_k, loss_k))

    assert jnp.allclose(mean_k, mean_r, rtol=2e-3, atol=2e-3)
    assert jnp.allclose(std_k, std_r, rtol=2e-3, atol=2e-3)
    assert jnp.allclose(loss_k, loss_r, rtol=2e-3, atol=2e-3), (loss_k, loss_r)

    # --- production path: large tile (capped at N) + bf16 matmul operands ---
    mean_b, std_b, loss_b = grpo_policy_loss(obs, act, old_lp, rewards, params,
                                             tile_rows=512, use_bf16=True)
    (mean_b, std_b, loss_b) = jax.block_until_ready((mean_b, std_b, loss_b))

    assert jnp.allclose(mean_b, mean_r, rtol=3e-2, atol=3e-2)
    assert jnp.allclose(std_b, std_r, rtol=3e-2, atol=3e-2)
    assert jnp.allclose(loss_b, loss_k, rtol=5e-2, atol=1e-1), (loss_b, loss_k)

    print("KERNEL_OK")
</pallas_src>

<mosaic_0001>
module attributes {stable_mosaic.version = 11 : i64} {
  func.func @kernel(%arg0: i32, %arg1: memref<128x16xf32, #tpu.memory_space<vmem>>, %arg2: memref<128x4xf32, #tpu.memory_space<vmem>>, %arg3: memref<128x1xf32, #tpu.memory_space<vmem>>, %arg4: memref<128x1xf32, #tpu.memory_space<vmem>>, %arg5: memref<16x32xf32, #tpu.memory_space<vmem>>, %arg6: memref<1x32xf32, #tpu.memory_space<vmem>>, %arg7: memref<1x32xf32, #tpu.memory_space<vmem>>, %arg8: memref<1x32xf32, #tpu.memory_space<vmem>>, %arg9: memref<32x8xf32, #tpu.memory_space<vmem>>, %arg10: memref<1x8xf32, #tpu.memory_space<vmem>>, %arg11: memref<128x8xf32, #tpu.memory_space<vmem>>, %arg12: memref<1x1xf32, #tpu.memory_space<vmem>>) attributes {dimension_semantics = [#tpu.dimension_semantics<arbitrary>], iteration_bounds = array<i64: 2>, scalar_prefetch = 0 : i64, scratch_operands = 0 : i64, tpu.core_type = #tpu.core_type<tc>, window_params = [{transform_indices = @transform_0, window_bounds = array<i64: 128, 16>}, {transform_indices = @transform_1, window_bounds = array<i64: 128, 4>}, {transform_indices = @transform_2, window_bounds = array<i64: 128, 1>}, {transform_indices = @transform_3, window_bounds = array<i64: 128, 1>}, {pipeline_mode = #tpu.pipeline_mode<synchronous>, transform_indices = @transform_4, window_bounds = array<i64: 16, 32>}, {pipeline_mode = #tpu.pipeline_mode<synchronous>, transform_indices = @transform_5, window_bounds = array<i64: 1, 32>}, {pipeline_mode = #tpu.pipeline_mode<synchronous>, transform_indices = @transform_6, window_bounds = array<i64: 1, 32>}, {pipeline_mode = #tpu.pipeline_mode<synchronous>, transform_indices = @transform_7, window_bounds = array<i64: 1, 32>}, {pipeline_mode = #tpu.pipeline_mode<synchronous>, transform_indices = @transform_8, window_bounds = array<i64: 32, 8>}, {pipeline_mode = #tpu.pipeline_mode<synchronous>, transform_indices = @transform_9, window_bounds = array<i64: 1, 8>}, {transform_indices = @transform_10, window_bounds = array<i64: 128, 8>}, {pipeline_mode = #tpu.pipeline_mode<synchronous>, transform_indices = @transform_11, window_bounds = array<i64: 1, 1>}]} {
    %c0_i32 = arith.constant 0 : i32
    %0 = arith.cmpi eq, %arg0, %c0_i32 : i32
    %1 = arith.extui %0 : i1 to i32
    %c0_i32_0 = arith.constant 0 : i32
    %2 = arith.cmpi ne, %1, %c0_i32_0 : i32
    scf.if %2 {
      %cst_45 = arith.constant 0.000000e+00 : f32
      %87 = vector.broadcast %cst_45 : f32 to vector<1x1xf32>
      %c0_46 = arith.constant 0 : index
      %c0_47 = arith.constant 0 : index
      %88 = vector.load %arg12[%c0_46, %c0_47] : memref<1x1xf32, #tpu.memory_space<vmem>>, vector<1x1xf32>
      tpu.vector_store %arg12[%c0_46, %c0_47], %87 {strides = array<i32>} : memref<1x1xf32, #tpu.memory_space<vmem>>, vector<1x1xf32>,
    } else {
    }
    %c0 = arith.constant 0 : index
    %c0_1 = arith.constant 0 : index
    %3 = vector.load %arg1[%c0, %c0_1] : memref<128x16xf32, #tpu.memory_space<vmem>>, vector<128x16xf32>
    %c0_2 = arith.constant 0 : index
    %c0_3 = arith.constant 0 : index
    %4 = vector.load %arg5[%c0_2, %c0_3] : memref<16x32xf32, #tpu.memory_space<vmem>>, vector<16x32xf32>
    %cst = arith.constant dense<0.000000e+00> : vector<128x32xf32>
    %5 = tpu.matmul %3, %4, %cst {dimension_numbers = #tpu.dot_dimension_numbers<[1], [0], [0], [1], [0, 0, 1, 1], [], []>} : vector<128x16xf32>, vector<16x32xf32>, vector<128x32xf32> -> vector<128x32xf32>
    %c0_4 = arith.constant 0 : index
    %c0_5 = arith.constant 0 : index
    %6 = vector.load %arg6[%c0_4, %c0_5] : memref<1x32xf32, #tpu.memory_space<vmem>>, vector<1x32xf32>
    %7 = vector.broadcast %6 : vector<1x32xf32> to vector<128x32xf32>
    %8 = arith.addf %5, %7 : vector<128x32xf32>
    %cst_6 = arith.constant dense<0.000000e+00> : vector<128xf32>
    %9 = vector.multi_reduction <add>, %8, %cst_6 [1] : vector<128x32xf32> to vector<128xf32>
    %10 = vector.shape_cast %9 : vector<128xf32> to vector<128x1xf32>
    %cst_7 = arith.constant 3.200000e+01 : f32
    %11 = vector.broadcast %cst_7 : f32 to vector<128x1xf32>
    %12 = arith.divf %10, %11 : vector<128x1xf32>
    %13 = vector.broadcast %12 : vector<128x1xf32> to vector<128x32xf32>
    %14 = arith.subf %8, %13 : vector<128x32xf32>
    %15 = arith.mulf %14, %14 : vector<128x32xf32>
    %cst_8 = arith.constant dense<0.000000e+00> : vector<128xf32>
    %16 = vector.multi_reduction <add>, %15, %cst_8 [1] : vector<128x32xf32> to vector<128xf32>
    %17 = vector.shape_cast %16 : vector<128xf32> to vector<128x1xf32>
    %cst_9 = arith.constant 3.200000e+01 : f32
    %18 = vector.broadcast %cst_9 : f32 to vector<128x1xf32>
    %19 = arith.divf %17, %18 : vector<128x1xf32>
    %20 = vector.broadcast %12 : vector<128x1xf32> to vector<128x32xf32>
    %21 = arith.subf %8, %20 : vector<128x32xf32>
    %cst_10 = arith.constant 9.99999974E-6 : f32
    %22 = vector.broadcast %cst_10 : f32 to vector<128x1xf32>
    %23 = arith.addf %19, %22 : vector<128x1xf32>
    %24 = math.rsqrt %23 : vector<128x1xf32>
    %25 = vector.broadcast %24 : vector<128x1xf32> to vector<128x32xf32>
    %26 = arith.mulf %21, %25 : vector<128x32xf32>
    %c0_11 = arith.constant 0 : index
    %c0_12 = arith.constant 0 : index
    %27 = vector.load %arg7[%c0_11, %c0_12] : memref<1x32xf32, #tpu.memory_space<vmem>>, vector<1x32xf32>
    %28 = vector.broadcast %27 : vector<1x32xf32> to vector<128x32xf32>
    %29 = arith.mulf %26, %28 : vector<128x32xf32>
    %c0_13 = arith.constant 0 : index
    %c0_14 = arith.constant 0 : index
    %30 = vector.load %arg8[%c0_13, %c0_14] : memref<1x32xf32, #tpu.memory_space<vmem>>, vector<1x32xf32>
    %31 = vector.broadcast %30 : vector<1x32xf32> to vector<128x32xf32>
    %32 = arith.addf %29, %31 : vector<128x32xf32>
    %cst_15 = arith.constant 0.000000e+00 : f32
    %33 = vector.broadcast %cst_15 : f32 to vector<128x32xf32>
    %34 = arith.maximumf %32, %33 : vector<128x32xf32>
    %c0_16 = arith.constant 0 : index
    %c0_17 = arith.constant 0 : index
    %35 = vector.load %arg9[%c0_16, %c0_17] : memref<32x8xf32, #tpu.memory_space<vmem>>, vector<32x8xf32>
    %cst_18 = arith.constant dense<0.000000e+00> : vector<128x8xf32>
    %36 = tpu.matmul %34, %35, %cst_18 {dimension_numbers = #tpu.dot_dimension_numbers<[1], [0], [0], [1], [0, 0, 1, 1], [], []>} : vector<128x32xf32>, vector<32x8xf32>, vector<128x8xf32> -> vector<128x8xf32>
    %c0_19 = arith.constant 0 : index
    %c0_20 = arith.constant 0 : index
    %37 = vector.load %arg10[%c0_19, %c0_20] : memref<1x8xf32, #tpu.memory_space<vmem>>, vector<1x8xf32>
    %38 = vector.broadcast %37 : vector<1x8xf32> to vector<128x8xf32>
    %39 = arith.addf %36, %38 : vector<128x8xf32>
    %40 = vector.extract_strided_slice %39 {offsets = [0, 0], sizes = [128, 4], strides = [1, 1]} : vector<128x8xf32> to vector<128x4xf32>
    %41 = vector.extract_strided_slice %39 {offsets = [0, 4], sizes = [128, 4], strides = [1, 1]} : vector<128x8xf32> to vector<128x4xf32>
    %cst_21 = arith.constant -2.000000e+01 : f32
    %cst_22 = arith.constant 2.000000e+00 : f32
    %42 = vector.broadcast %cst_21 : f32 to vector<128x4xf32>
    %43 = arith.maximumf %42, %41 : vector<128x4xf32>
    %44 = vector.broadcast %cst_22 : f32 to vector<128x4xf32>
    %45 = arith.minimumf %44, %43 : vector<128x4xf32>
    %46 = math.exp %45 : vector<128x4xf32>
    %c0_23 = arith.constant 0 : index
    %c0_24 = arith.constant 0 : index
    %47 = vector.load %arg11[%c0_23, %c0_24] : memref<128x8xf32, #tpu.memory_space<vmem>>, vector<128x4xf32>
    tpu.vector_store %arg11[%c0_23, %c0_24], %40 {strides = array<i32>} : memref<128x8xf32, #tpu.memory_space<vmem>>, vector<128x4xf32>,
    %c0_25 = arith.constant 0 : index
    %c4 = arith.constant 4 : index
    %48 = vector.load %arg11[%c0_25, %c4] : memref<128x8xf32, #tpu.memory_space<vmem>>, vector<128x4xf32>
    tpu.vector_store %arg11[%c0_25, %c4], %46 {strides = array<i32>} : memref<128x8xf32, #tpu.memory_space<vmem>>, vector<128x4xf32>,
    %cst_26 = arith.constant -13.8155107 : f32
    %49 = vector.broadcast %cst_26 : f32 to vector<128x4xf32>
    %50 = arith.maximumf %45, %49 : vector<128x4xf32>
    %cst_27 = arith.constant 0.000000e+00 : f32
    %51 = vector.broadcast %cst_27 : f32 to vector<128x4xf32>
    %52 = arith.subf %51, %50 : vector<128x4xf32>
    %53 = math.exp %52 : vector<128x4xf32>
    %c0_28 = arith.constant 0 : index
    %c0_29 = arith.constant 0 : index
    %54 = vector.load %arg2[%c0_28, %c0_29] : memref<128x4xf32, #tpu.memory_space<vmem>>, vector<128x4xf32>
    %55 = arith.subf %54, %40 : vector<128x4xf32>
    %56 = arith.mulf %55, %53 : vector<128x4xf32>
    %cst_30 = arith.constant -5.000000e-01 : f32
    %57 = vector.broadcast %cst_30 : f32 to vector<128x4xf32>
    %58 = arith.mulf %57, %56 : vector<128x4xf32>
    %59 = arith.mulf %58, %56 : vector<128x4xf32>
    %60 = arith.subf %59, %50 : vector<128x4xf32>
    %cst_31 = arith.constant 0.918938517 : f32
    %61 = vector.broadcast %cst_31 : f32 to vector<128x4xf32>
    %62 = arith.subf %60, %61 : vector<128x4xf32>
    %cst_32 = arith.constant dense<0.000000e+00> : vector<128xf32>
    %63 = vector.multi_reduction <add>, %62, %cst_32 [1] : vector<128x4xf32> to vector<128xf32>
    %64 = vector.shape_cast %63 : vector<128xf32> to vector<128x1xf32>
    %c0_33 = arith.constant 0 : index
    %c0_34 = arith.constant 0 : index
    %65 = vector.load %arg4[%c0_33, %c0_34] : memref<128x1xf32, #tpu.memory_space<vmem>>, vector<128x1xf32>
    %c0_35 = arith.constant 0 : index
    %c0_36 = arith.constant 0 : index
    %66 = vector.load %arg3[%c0_35, %c0_36] : memref<128x1xf32, #tpu.memory_space<vmem>>, vector<128x1xf32>
    %67 = arith.subf %64, %66 : vector<128x1xf32>
    %68 = math.exp %67 : vector<128x1xf32>
    %cst_37 = arith.constant 8.000000e-01 : f32
    %cst_38 = arith.constant 1.200000e+00 : f32
    %69 = vector.broadcast %cst_37 : f32 to vector<128x1xf32>
    %70 = arith.maximumf %69, %68 : vector<128x1xf32>
    %71 = vector.broadcast %cst_38 : f32 to vector<128x1xf32>
    %72 = arith.minimumf %71, %70 : vector<128x1xf32>
    %73 = arith.mulf %68, %65 : vector<128x1xf32>
    %74 = arith.mulf %72, %65 : vector<128x1xf32>
    %75 = arith.minimumf %73, %74 : vector<128x1xf32>
    %c0_39 = arith.constant 0 : index
    %c0_40 = arith.constant 0 : index
    %76 = vector.load %arg12[%c0_39, %c0_40] : memref<1x1xf32, #tpu.memory_space<vmem>>, vector<1x1xf32>
    %77 = vector.shape_cast %75 : vector<128x1xf32> to vector<1x128x1xf32>
    %cst_41 = arith.constant dense<0.000000e+00> : vector<1xf32>
    %78 = vector.multi_reduction <add>, %77, %cst_41 [1, 2] : vector<1x128x1xf32> to vector<1xf32>
    %79 = vector.shape_cast %78 : vector<1xf32> to vector<1x1x1xf32>
    %80 = vector.extract %79[0, 0, 0] : f32 from vector<1x1x1xf32>
    %81 = vector.broadcast %80 : f32 to vector<1x1xf32>
    %82 = arith.addf %76, %81 : vector<1x1xf32>
    %c0_42 = arith.constant 0 : index
    %c0_43 = arith.constant 0 : index
    %83 = vector.load %arg12[%c0_42, %c0_43] : memref<1x1xf32, #tpu.memory_space<vmem>>, vector<1x1xf32>
    tpu.vector_store %arg12[%c0_42, %c0_43], %82 {strides = array<i32>} : memref<1x1xf32, #tpu.memory_space<vmem>>, vector<1x1xf32>,
    %c1_i32 = arith.constant 1 : i32
    %84 = arith.cmpi eq, %arg0, %c1_i32 : i32
    %85 = arith.extui %84 : i1 to i32
    %c0_i32_44 = arith.constant 0 : i32
    %86 = arith.cmpi ne, %85, %c0_i32_44 : i32
    scf.if %86 {
      %c0_45 = arith.constant 0 : index
      %c0_46 = arith.constant 0 : index
      %87 = vector.load %arg12[%c0_45, %c0_46] : memref<1x1xf32, #tpu.memory_space<vmem>>, vector<1x1xf32>
      %cst_47 = arith.constant -3.906250e-03 : f32
      %88 = vector.broadcast %cst_47 : f32 to vector<1x1xf32>
      %89 = arith.mulf %87, %88 : vector<1x1xf32>
      %c0_48 = arith.constant 0 : index
      %c0_49 = arith.constant 0 : index
      %90 = vector.load %arg12[%c0_48, %c0_49] : memref<1x1xf32, #tpu.memory_space<vmem>>, vector<1x1xf32>
      tpu.vector_store %arg12[%c0_48, %c0_49], %89 {strides = array<i32>} : memref<1x1xf32, #tpu.memory_space<vmem>>, vector<1x1xf32>,
    } else {
    }
    return
  }
  func.func @transform_0(%arg0: i32) -> (i32, i32) {
    %c0_i32 = arith.constant 0 : i32
    %c0_i32_0 = arith.constant 0 : i32
    return %arg0, %c0_i32 : i32, i32
  }
  func.func @transform_1(%arg0: i32) -> (i32, i32) {
    %c0_i32 = arith.constant 0 : i32
    %c0_i32_0 = arith.constant 0 : i32
    return %arg0, %c0_i32 : i32, i32
  }
  func.func @transform_2(%arg0: i32) -> (i32, i32) {
    %c0_i32 = arith.constant 0 : i32
    %c0_i32_0 = arith.constant 0 : i32
    return %arg0, %c0_i32 : i32, i32
  }
  func.func @transform_3(%arg0: i32) -> (i32, i32) {
    %c0_i32 = arith.constant 0 : i32
    %c0_i32_0 = arith.constant 0 : i32
    return %arg0, %c0_i32 : i32, i32
  }
  func.func @transform_4(%arg0: i32) -> (i32, i32) {
    %c0_i32 = arith.constant 0 : i32
    %c0_i32_0 = arith.constant 0 : i32
    %c0_i32_1 = arith.constant 0 : i32
    return %c0_i32, %c0_i32_0 : i32, i32
  }
  func.func @transform_5(%arg0: i32) -> (i32, i32) {
    %c0_i32 = arith.constant 0 : i32
    %c0_i32_0 = arith.constant 0 : i32
    %c0_i32_1 = arith.constant 0 : i32
    return %c0_i32, %c0_i32_0 : i32, i32
  }
  func.func @transform_6(%arg0: i32) -> (i32, i32) {
    %c0_i32 = arith.constant 0 : i32
    %c0_i32_0 = arith.constant 0 : i32
    %c0_i32_1 = arith.constant 0 : i32
    return %c0_i32, %c0_i32_0 : i32, i32
  }
  func.func @transform_7(%arg0: i32) -> (i32, i32) {
    %c0_i32 = arith.constant 0 : i32
    %c0_i32_0 = arith.constant 0 : i32
    %c0_i32_1 = arith.constant 0 : i32
    return %c0_i32, %c0_i32_0 : i32, i32
  }
  func.func @transform_8(%arg0: i32) -> (i32, i32) {
    %c0_i32 = arith.constant 0 : i32
    %c0_i32_0 = arith.constant 0 : i32
    %c0_i32_1 = arith.constant 0 : i32
    return %c0_i32, %c0_i32_0 : i32, i32
  }
  func.func @transform_9(%arg0: i32) -> (i32, i32) {
    %c0_i32 = arith.constant 0 : i32
    %c0_i32_0 = arith.constant 0 : i32
    %c0_i32_1 = arith.constant 0 : i32
    return %c0_i32, %c0_i32_0 : i32, i32
  }
  func.func @transform_10(%arg0: i32) -> (i32, i32) {
    %c0_i32 = arith.constant 0 : i32
    %c0_i32_0 = arith.constant 0 : i32
    return %arg0, %c0_i32 : i32, i32
  }
  func.func @transform_11(%arg0: i32) -> (i32, i32) {
    %c0_i32 = arith.constant 0 : i32
    %c0_i32_0 = arith.constant 0 : i32
    %c0_i32_1 = arith.constant 0 : i32
    return %c0_i32, %c0_i32_0 : i32, i32
  }
}

</mosaic_0001>

<llo_original>
// kernel: tpu_custom_call.1
$region0: #{tpu_custom_call.1}
  #allocation0 [shape = 'u32[]', space=smem, size = 0x4, offset = 0x4, fixed_abs, tag = 'smem constant byte address 0x4 - core index']
  #allocation1 [shape = 'u32[72,128]{1,0:T(1,128)}', space=vmem, size = 0x9000, scoped, tag = 'internal scratch']
  %s0 = inlined_call_operand.vmem [shape: f32[256,16], index: 0, kind: input, shape index: {}]
  %s1 = inlined_call_operand.vmem [shape: f32[256,4], index: 1, kind: input, shape index: {}]
  %s2 = inlined_call_operand.vmem [shape: f32[256,1], index: 2, kind: input, shape index: {}]
  %s3 = inlined_call_operand.vmem [shape: f32[256,1], index: 3, kind: input, shape index: {}]
  %s4 = inlined_call_operand.vmem [shape: f32[16,32], index: 4, kind: input, shape index: {}]
  %s5 = inlined_call_operand.vmem [shape: f32[1,32], index: 5, kind: input, shape index: {}]
  %s6 = inlined_call_operand.vmem [shape: f32[1,32], index: 6, kind: input, shape index: {}]
  %s7 = inlined_call_operand.vmem [shape: f32[1,32], index: 7, kind: input, shape index: {}]
  %s8 = inlined_call_operand.vmem [shape: f32[32,8], index: 8, kind: input, shape index: {}]
  %s9 = inlined_call_operand.vmem [shape: f32[1,8], index: 9, kind: input, shape index: {}]
  %s10 = inlined_call_operand.vmem [shape: f32[256,8], index: 10, kind: output, shape index: {0}]
  %s11 = inlined_call_operand.hbm [shape: f32[1,1], index: 11, kind: output, shape index: {1}]
  %12 = xla_tuple %s10, %s11
  %s13 = sld [smem:[#allocation0]]
  $region89: #{tpu_custom_call.1} parent=0
    _
  %s15 = ssub.s32 1, %s13
  %s16 = scalar_select 0, %s15, %s13
  $region1: #{tpu_custom_call.1} parent=0
    #allocation2 [shape = 'u8[512]{0}', space=vmem, size = 0x400, scoped, tag = 'output window, operand 1, single buffered']
    #allocation3 [shape = 's32[2]{0}', space=sflag, size = 0x8, scoped, tag = 'scoped memory for tpu_custom_call.1']
    %17 = vsyncpa [#allocation3], 0
    loop: start=0, step=1, limit=4
    $region2: #{tpu_custom_call.1} parent=1 // loop_pre_header
      _
    $region3: #{tpu_custom_call.1} parent=1 // loop_header
      %s19 = sphi 0, %s23
      %p20 = scmp.ge.s32.totalorder %s19, 4
      %s29 = sphi 0, %s31
      %s32 = sphi 0, %s29
      %s33 = sphi 0, %s32
      %s49 = sphi 0, %s33
      %s55 = sphi 0, %s57
      %s58 = sphi 0, %s55
      %s59 = sphi 0, %s58
      %s75 = sphi 0, %s59
      %s81 = sphi 0, %s83
      %s84 = sphi 0, %s81
      %s85 = sphi 0, %s84
      %s101 = sphi 0, %s85
      %s107 = sphi 0, %s109
      %s110 = sphi 0, %s107
      %s111 = sphi 0, %s110
      %s127 = sphi 0, %s111
      %s131 = sphi 0, %s131
      %s133 = sphi 0, %s131
      %s134 = sphi 0, %s133
      %s148 = sphi 0, %s134
      %s152 = sphi 0, %s152
      %s154 = sphi 0, %s152
      %s155 = sphi 0, %s154
      %s169 = sphi 0, %s155
      %s173 = sphi 0, %s173
      %s175 = sphi 0, %s173
      %s176 = sphi 0, %s175
      %s190 = sphi 0, %s176
      %s194 = sphi 0, %s194
      %s196 = sphi 0, %s194
      %s197 = sphi 0, %s196
      %s211 = sphi 0, %s197
      %s215 = sphi 0, %s215
      %s217 = sphi 0, %s215
      %s218 = sphi 0, %s217
      %s232 = sphi 0, %s218
      %s236 = sphi 0, %s236
      %s238 = sphi 0, %s236
      %s239 = sphi 0, %s238
      %s253 = sphi 0, %s239
      %s259 = sphi 0, %s261
      %s262 = sphi 0, %s259
      %s263 = sphi 0, %s262
      %s279 = sphi 0, %s263
      %s283 = sphi 0, %s283
      %s285 = sphi 0, %s283
      %s286 = sphi 0, %s285
      %s300 = sphi 0, %s286
    $region4: #{tpu_custom_call.1} parent=1 // loop_header_branch
      %22 = sbr.rel (%p20) target = $region8
    $region5: #{tpu_custom_call.1} parent=1 // loop_body
      %s24 = ssub.s32 %s19, 1
      %s25 = ssub.s32 %s19, 2
      %s26 = sadd.s32 %s19, 1
      %s27 = ssub.s32 %s19, %s26
      %p28 = scmp.eq.s32.totalorder %s27, 0
      %s30 = sadd.s32 %s29, 1
      %s31 = scalar_select %p28, %s29, %s30
      %p34 = pneg %p28
      %p35 = scmp.eq.s32.totalorder %s19, 1
      %p36 = por %p34, %p35
      %p37 = scmp.ne.s32.totalorder %s29, %s32
      %p38 = scmp.eq.s32.totalorder %s19, 0
      %p39 = por %p37, %p38
      %p40 = scmp.ne.s32.totalorder %s29, %s32
      %p41 = scmp.eq.s32.totalorder %s24, 1
      %p42 = por %p40, %p41
      %p43 = scmp.ne.s32.totalorder %s32, %s33
      %p44 = scmp.eq.s32.totalorder %s24, 0
      %p45 = por %p43, %p44
      %p46 = scmp.ne.s32.totalorder %s32, %s33
      %p47 = scmp.eq.s32.totalorder %s25, 1
      %p48 = por %p46, %p47
      %p50 = scmp.ne.s32.totalorder %s33, %s49
      %p51 = scmp.eq.s32.totalorder %s25, 0
      %p52 = por %p50, %p51
      %s53 = ssub.s32 %s19, %s26
      %p54 = scmp.eq.s32.totalorder %s53, 0
      %s56 = sadd.s32 %s55, 1
      %s57 = scalar_select %p54, %s55, %s56
      %p60 = pneg %p54
      %p61 = scmp.eq.s32.totalorder %s19, 1
      %p62 = por %p60, %p61
      %p63 = scmp.ne.s32.totalorder %s55, %s58
      %p64 = scmp.eq.s32.totalorder %s19, 0
      %p65 = por %p63, %p64
      %p66 = scmp.ne.s32.totalorder %s55, %s58
      %p67 = scmp.eq.s32.totalorder %s24, 1
      %p68 = por %p66, %p67
      %p69 = scmp.ne.s32.totalorder %s58, %s59
      %p70 = scmp.eq.s32.totalorder %s24, 0
      %p71 = por %p69, %p70
      %p72 = scmp.ne.s32.totalorder %s58, %s59
      %p73 = scmp.eq.s32.totalorder %s25, 1
      %p74 = por %p72, %p73
      %p76 = scmp.ne.s32.totalorder %s59, %s75
      %p77 = scmp.eq.s32.totalorder %s25, 0
      %p78 = por %p76, %p77
      %s79 = ssub.s32 %s19, %s26
      %p80 = scmp.eq.s32.totalorder %s79, 0
      %s82 = sadd.s32 %s81, 1
      %s83 = scalar_select %p80, %s81, %s82
      %p86 = pneg %p80
      %p87 = scmp.eq.s32.totalorder %s19, 1
      %p88 = por %p86, %p87
      %p89 = scmp.ne.s32.totalorder %s81, %s84
      %p90 = scmp.eq.s32.totalorder %s19, 0
      %p91 = por %p89, %p90
      %p92 = scmp.ne.s32.totalorder %s81, %s84
      %p93 = scmp.eq.s32.totalorder %s24, 1
      %p94 = por %p92, %p93
      %p95 = scmp.ne.s32.totalorder %s84, %s85
      %p96 = scmp.eq.s32.totalorder %s24, 0
      %p97 = por %p95, %p96
      %p98 = scmp.ne.s32.totalorder %s84, %s85
      %p99 = scmp.eq.s32.totalorder %s25, 1
      %p100 = por %p98, %p99
      %p102 = scmp.ne.s32.totalorder %s85, %s101
      %p103 = scmp.eq.s32.totalorder %s25, 0
      %p104 = por %p102, %p103
      %s105 = ssub.s32 %s19, %s26
      %p106 = scmp.eq.s32.totalorder %s105, 0
      %s108 = sadd.s32 %s107, 1
      %s109 = scalar_select %p106, %s107, %s108
      %p112 = pneg %p106
      %p113 = scmp.eq.s32.totalorder %s19, 1
      %p114 = por %p112, %p113
      %p115 = scmp.ne.s32.totalorder %s107, %s110
      %p116 = scmp.eq.s32.totalorder %s19, 0
      %p117 = por %p115, %p116
      %p118 = scmp.ne.s32.totalorder %s107, %s110
      %p119 = scmp.eq.s32.totalorder %s24, 1
      %p120 = por %p118, %p119
      %p121 = scmp.ne.s32.totalorder %s110, %s111
      %p122 = scmp.eq.s32.totalorder %s24, 0
      %p123 = por %p121, %p122
      %p124 = scmp.ne.s32.totalorder %s110, %s111
      %p125 = scmp.eq.s32.totalorder %s25, 1
      %p126 = por %p124, %p125
      %p128 = scmp.ne.s32.totalorder %s111, %s127
      %p129 = scmp.eq.s32.totalorder %s25, 0
      %p130 = por %p128, %p129
      %s132 = sadd.s32 %s131, 1
      %p135 = scmp.eq.s32.totalorder %s19, 1
      %p136 = scmp.ne.s32.totalorder %s131, %s133
      %p137 = scmp.eq.s32.totalorder %s19, 0
      %p138 = por %p136, %p137
      %p139 = scmp.ne.s32.totalorder %s131, %s133
      %p140 = scmp.eq.s32.totalorder %s24, 1
      %p141 = por %p139, %p140
      %p142 = scmp.ne.s32.totalorder %s133, %s134
      %p143 = scmp.eq.s32.totalorder %s24, 0
      %p144 = por %p142, %p143
      %p145 = scmp.ne.s32.totalorder %s133, %s134
      %p146 = scmp.eq.s32.totalorder %s25, 1
      %p147 = por %p145, %p146
      %p149 = scmp.ne.s32.totalorder %s134, %s148
      %p150 = scmp.eq.s32.totalorder %s25, 0
      %p151 = por %p149, %p150
      %s153 = sadd.s32 %s152, 1
      %p156 = scmp.eq.s32.totalorder %s19, 1
      %p157 = scmp.ne.s32.totalorder %s152, %s154
      %p158 = scmp.eq.s32.totalorder %s19, 0
      %p159 = por %p157, %p158
      %p160 = scmp.ne.s32.totalorder %s152, %s154
      %p161 = scmp.eq.s32.totalorder %s24, 1
      %p162 = por %p160, %p161
      %p163 = scmp.ne.s32.totalorder %s154, %s155
      %p164 = scmp.eq.s32.totalorder %s24, 0
      %p165 = por %p163, %p164
      %p166 = scmp.ne.s32.totalorder %s154, %s155
      %p167 = scmp.eq.s32.totalorder %s25, 1
      %p168 = por %p166, %p167
      %p170 = scmp.ne.s32.totalorder %s155, %s169
      %p171 = scmp.eq.s32.totalorder %s25, 0
      %p172 = por %p170, %p171
      %s174 = sadd.s32 %s173, 1
      %p177 = scmp.eq.s32.totalorder %s19, 1
      %p178 = scmp.ne.s32.totalorder %s173, %s175
      %p179 = scmp.eq.s32.totalorder %s19, 0
      %p180 = por %p178, %p179
      %p181 = scmp.ne.s32.totalorder %s173, %s175
      %p182 = scmp.eq.s32.totalorder %s24, 1
      %p183 = por %p181, %p182
      %p184 = scmp.ne.s32.totalorder %s175, %s176
      %p185 = scmp.eq.s32.totalorder %s24, 0
      %p186 = por %p184, %p185
      %p187 = scmp.ne.s32.totalorder %s175, %s176
      %p188 = scmp.eq.s32.totalorder %s25, 1
      %p189 = por %p187, %p188
      %p191 = scmp.ne.s32.totalorder %s176, %s190
      %p192 = scmp.eq.s32.totalorder %s25, 0
      %p193 = por %p191, %p192
      %s195 = sadd.s32 %s194, 1
      %p198 = scmp.eq.s32.totalorder %s19, 1
      %p199 = scmp.ne.s32.totalorder %s194, %s196
      %p200 = scmp.eq.s32.totalorder %s19, 0
      %p201 = por %p199, %p200
      %p202 = scmp.ne.s32.totalorder %s194, %s196
      %p203 = scmp.eq.s32.totalorder %s24, 1
      %p204 = por %p202, %p203
      %p205 = scmp.ne.s32.totalorder %s196, %s197
      %p206 = scmp.eq.s32.totalorder %s24, 0
      %p207 = por %p205, %p206
      %p208 = scmp.ne.s32.totalorder %s196, %s197
      %p209 = scmp.eq.s32.totalorder %s25, 1
      %p210 = por %p208, %p209
      %p212 = scmp.ne.s32.totalorder %s197, %s211
      %p213 = scmp.eq.s32.totalorder %s25, 0
      %p214 = por %p212, %p213
      %s216 = sadd.s32 %s215, 1
      %p219 = scmp.eq.s32.totalorder %s19, 1
      %p220 = scmp.ne.s32.totalorder %s215, %s217
      %p221 = scmp.eq.s32.totalorder %s19, 0
      %p222 = por %p220, %p221
      %p223 = scmp.ne.s32.totalorder %s215, %s217
      %p224 = scmp.eq.s32.totalorder %s24, 1
      %p225 = por %p223, %p224
      %p226 = scmp.ne.s32.totalorder %s217, %s218
      %p227 = scmp.eq.s32.totalorder %s24, 0
      %p228 = por %p226, %p227
      %p229 = scmp.ne.s32.totalorder %s217, %s218
      %p230 = scmp.eq.s32.totalorder %s25, 1
      %p231 = por %p229, %p230
      %p233 = scmp.ne.s32.totalorder %s218, %s232
      %p234 = scmp.eq.s32.totalorder %s25, 0
      %p235 = por %p233, %p234
      %s237 = sadd.s32 %s236, 1
      %p240 = scmp.eq.s32.totalorder %s19, 1
      %p241 = scmp.ne.s32.totalorder %s236, %s238
      %p242 = scmp.eq.s32.totalorder %s19, 0
      %p243 = por %p241, %p242
      %p244 = scmp.ne.s32.totalorder %s236, %s238
      %p245 = scmp.eq.s32.totalorder %s24, 1
      %p246 = por %p244, %p245
      %p247 = scmp.ne.s32.totalorder %s238, %s239
      %p248 = scmp.eq.s32.totalorder %s24, 0
      %p249 = por %p247, %p248
      %p250 = scmp.ne.s32.totalorder %s238, %s239
      %p251 = scmp.eq.s32.totalorder %s25, 1
      %p252 = por %p250, %p251
      %p254 = scmp.ne.s32.totalorder %s239, %s253
      %p255 = scmp.eq.s32.totalorder %s25, 0
      %p256 = por %p254, %p255
      %s257 = ssub.s32 %s19, %s26
      %p258 = scmp.eq.s32.totalorder %s257, 0
      %s260 = sadd.s32 %s259, 1
      %s261 = scalar_select %p258, %s259, %s260
      %p264 = pneg %p258
      %p265 = scmp.eq.s32.totalorder %s19, 1
      %p266 = por %p264, %p265
      %p267 = scmp.ne.s32.totalorder %s259, %s262
      %p268 = scmp.eq.s32.totalorder %s19, 0
      %p269 = por %p267, %p268
      %p270 = scmp.ne.s32.totalorder %s259, %s262
      %p271 = scmp.eq.s32.totalorder %s24, 1
      %p272 = por %p270, %p271
      %p273 = scmp.ne.s32.totalorder %s262, %s263
      %p274 = scmp.eq.s32.totalorder %s24, 0
      %p275 = por %p273, %p274
      %p276 = scmp.ne.s32.totalorder %s262, %s263
      %p277 = scmp.eq.s32.totalorder %s25, 1
      %p278 = por %p276, %p277
      %p280 = scmp.ne.s32.totalorder %s263, %s279
      %p281 = scmp.eq.s32.totalorder %s25, 0
      %p282 = por %p280, %p281
      %s284 = sadd.s32 %s283, 1
      %p287 = scmp.eq.s32.totalorder %s19, 1
      %p288 = scmp.ne.s32.totalorder %s283, %s285
      %p289 = scmp.eq.s32.totalorder %s19, 0
      %p290 = por %p288, %p289
      %p291 = scmp.ne.s32.totalorder %s283, %s285
      %p292 = scmp.eq.s32.totalorder %s24, 1
      %p293 = por %p291, %p292
      %p294 = scmp.ne.s32.totalorder %s285, %s286
      %p295 = scmp.eq.s32.totalorder %s24, 0
      %p296 = por %p294, %p295
      %p297 = scmp.ne.s32.totalorder %s285, %s286
      %p298 = scmp.eq.s32.totalorder %s25, 1
      %p299 = por %p297, %p298
      %p301 = scmp.ne.s32.totalorder %s286, %s300
      %p302 = scmp.eq.s32.totalorder %s25, 0
      %p303 = por %p301, %p302
      %p304 = scmp.le.s32.totalorder 1, %s19
      %p305 = scmp.lt.s32.totalorder %s19, 3
      %p306 = pnand %p304, %p305
      %p307 = pneg %p306
      // Predicated region
      $region9: #{tpu_custom_call.1} parent=5 // pred_check
        _
      $region10: #{tpu_custom_call.1} parent=5 // pred_check_branch
        %309 = sbr.rel (%p306) target = $region12
      $region11: #{tpu_custom_call.1} parent=5 // pred_region
        %s310 = ssub.s32 %s19, 1
        // Predicated region
        $region13: #{tpu_custom_call.1} parent=11 // pred_check
          %p311 = pneg %p144
        $region14: #{tpu_custom_call.1} parent=11 // pred_check_branch
          %313 = sbr.rel (%p311) target = $region16
        $region15: #{tpu_custom_call.1} parent=11 // pred_region
          _
        $region16: #{tpu_custom_call.1} parent=11 // pred_fallthru
          _
        // Predicated region
        $region17: #{tpu_custom_call.1} parent=11 // pred_check
          %p314 = pneg %p165
        $region18: #{tpu_custom_call.1} parent=11 // pred_check_branch
          %316 = sbr.rel (%p314) target = $region20
        $region19: #{tpu_custom_call.1} parent=11 // pred_region
          _
        $region20: #{tpu_custom_call.1} parent=11 // pred_fallthru
          _
        // Predicated region
        $region21: #{tpu_custom_call.1} parent=11 // pred_check
          %p317 = pneg %p186
        $region22: #{tpu_custom_call.1} parent=11 // pred_check_branch
          %319 = sbr.rel (%p317) target = $region24
        $region23: #{tpu_custom_call.1} parent=11 // pred_region
          _
        $region24: #{tpu_custom_call.1} parent=11 // pred_fallthru
          _
        // Predicated region
        $region25: #{tpu_custom_call.1} parent=11 // pred_check
          %p320 = pneg %p207
        $region26: #{tpu_custom_call.1} parent=11 // pred_check_branch
          %322 = sbr.rel (%p320) target = $region28
        $region27: #{tpu_custom_call.1} parent=11 // pred_region
          _
        $region28: #{tpu_custom_call.1} parent=11 // pred_fallthru
          _
        // Predicated region
        $region29: #{tpu_custom_call.1} parent=11 // pred_check
          %p323 = pneg %p228
        $region30: #{tpu_custom_call.1} parent=11 // pred_check_branch
          %325 = sbr.rel (%p323) target = $region32
        $region31: #{tpu_custom_call.1} parent=11 // pred_region
          _
        $region32: #{tpu_custom_call.1} parent=11 // pred_fallthru
          _
        // Predicated region
        $region33: #{tpu_custom_call.1} parent=11 // pred_check
          %p326 = pneg %p249
        $region34: #{tpu_custom_call.1} parent=11 // pred_check_branch
          %328 = sbr.rel (%p326) target = $region36
        $region35: #{tpu_custom_call.1} parent=11 // pred_region
          _
        $region36: #{tpu_custom_call.1} parent=11 // pred_fallthru
          _
      $region12: #{tpu_custom_call.1} parent=5 // pred_fallthru
        _
      %p329 = scmp.lt.s32.totalorder %s19, 2
      // Predicated region
      $region37: #{tpu_custom_call.1} parent=5 // pred_check
        %p330 = pneg %p329
      $region38: #{tpu_custom_call.1} parent=5 // pred_check_branch
        %332 = sbr.rel (%p330) target = $region40
      $region39: #{tpu_custom_call.1} parent=5 // pred_region
        // Predicated region
        $region41: #{tpu_custom_call.1} parent=39 // pred_check
          %p333 = pneg %p39
        $region42: #{tpu_custom_call.1} parent=39 // pred_check_branch
          %335 = sbr.rel (%p333) target = $region44
        $region43: #{tpu_custom_call.1} parent=39 // pred_region
          %s336 = smul.u32 16, %s19
          %p337 = scmp.lt.s32.totalorder %s336, 31
          %s338 = scalar_select %p337, %s336, 31
          %s339 = smul.addr %s338, 8
          %s340 = scalar_lea.vmem %s0, %s339
          %s341 = smul.u32 16, %s19
        $region44: #{tpu_custom_call.1} parent=39 // pred_fallthru
          _
        // Predicated region
        $region45: #{tpu_custom_call.1} parent=39 // pred_check
          %p342 = pneg %p65
        $region46: #{tpu_custom_call.1} parent=39 // pred_check_branch
          %344 = sbr.rel (%p342) target = $region48
        $region47: #{tpu_custom_call.1} parent=39 // pred_region
          %s345 = smul.u32 16, %s19
          %p346 = scmp.lt.s32.totalorder %s345, 31
          %s347 = scalar_select %p346, %s345, 31
          %s348 = smul.addr %s347, 8
          %s349 = scalar_lea.vmem %s1, %s348
          %s350 = smul.u32 16, %s19
        $region48: #{tpu_custom_call.1} parent=39 // pred_fallthru
          _
        // Predicated region
        $region49: #{tpu_custom_call.1} parent=39 // pred_check
          %p351 = pneg %p91
        $region50: #{tpu_custom_call.1} parent=39 // pred_check_branch
          %353 = sbr.rel (%p351) target = $region52
        $region51: #{tpu_custom_call.1} parent=39 // pred_region
          %s354 = smul.u32 16, %s19
          %p355 = scmp.lt.s32.totalorder %s354, 31
          %s356 = scalar_select %p355, %s354, 31
          %s357 = smul.addr %s356, 8
          %s358 = scalar_lea.vmem %s2, %s357
          %s359 = smul.u32 16, %s19
        $region52: #{tpu_custom_call.1} parent=39 // pred_fallthru
          _
        // Predicated region
        $region53: #{tpu_custom_call.1} parent=39 // pred_check
          %p360 = pneg %p117
        $region54: #{tpu_custom_call.1} parent=39 // pred_check_branch
          %362 = sbr.rel (%p360) target = $region56
        $region55: #{tpu_custom_call.1} parent=39 // pred_region
          %s363 = smul.u32 16, %s19
          %p364 = scmp.lt.s32.totalorder %s363, 31
          %s365 = scalar_select %p364, %s363, 31
          %s366 = smul.addr %s365, 8
          %s367 = scalar_lea.vmem %s3, %s366
          %s368 = smul.u32 16, %s19
        $region56: #{tpu_custom_call.1} parent=39 // pred_fallthru
          _
      $region40: #{tpu_custom_call.1} parent=5 // pred_fallthru
        _
      %p369 = scmp.le.s32.totalorder 1, %s19
      %p370 = scmp.lt.s32.totalorder %s19, 3
      %p371 = pnand %p369, %p370
      %p372 = pneg %p371
      // Predicated region
      $region57: #{tpu_custom_call.1} parent=5 // pred_check
        _
      $region58: #{tpu_custom_call.1} parent=5 // pred_check_branch
        %374 = sbr.rel (%p371) target = $region60
      $region59: #{tpu_custom_call.1} parent=5 // pred_region
        %s375 = ssub.s32 %s19, 1
        %s376 = smul.u32 16, %s24
        %p377 = scmp.lt.s32.totalorder %s376, 31
        %s378 = scalar_select %p377, %s376, 31
        %s379 = smul.addr %s378, 8
        %s380 = scalar_lea.vmem %s0, %s379
        %p381 = pneg %p45
        %p382 = pneg %p42
        %s383 = smul.u32 16, %s24
        %p384 = scmp.lt.s32.totalorder %s383, 31
        %s385 = scalar_select %p384, %s383, 31
        %s386 = smul.addr %s385, 8
        %s387 = scalar_lea.vmem %s1, %s386
        %p388 = pneg %p71
        %p389 = pneg %p68
        %s390 = smul.u32 16, %s24
        %p391 = scmp.lt.s32.totalorder %s390, 31
        %s392 = scalar_select %p391, %s390, 31
        %s393 = smul.addr %s392, 8
        %s394 = scalar_lea.vmem %s2, %s393
        %p395 = pneg %p97
        %p396 = pneg %p94
        %s397 = smul.u32 16, %s24
        %p398 = scmp.lt.s32.totalorder %s397, 31
        %s399 = scalar_select %p398, %s397, 31
        %s400 = smul.addr %s399, 8
        %s401 = scalar_lea.vmem %s3, %s400
        %p402 = pneg %p123
        %p403 = pneg %p120
        %p404 = pneg %p144
        %p405 = pneg %p141
        %p406 = pneg %p165
        %p407 = pneg %p162
        %p408 = pneg %p186
        %p409 = pneg %p183
        %p410 = pneg %p207
        %p411 = pneg %p204
        %p412 = pneg %p228
        %p413 = pneg %p225
        %p414 = pneg %p249
        %p415 = pneg %p246
        %p416 = pneg %p275
        %p417 = pneg %p272
        %s418 = smul.u32 16, %s24
        %p419 = scmp.lt.s32.totalorder %s418, 31
        %s420 = scalar_select %p419, %s418, 31
        %s421 = smul.addr %s420, 8
        %s422 = scalar_lea.vmem %s10, %s421
        %p423 = pneg %p296
        %p424 = pneg %p293
        %s425 = smul.u32 16, %s24
        %p426 = scmp.lt.s32.totalorder %s425, 31
        %s427 = scalar_select %p426, %s425, 31
        %s428 = smul.addr %s427, 8
        %s429 = scalar_lea.vmem %s0, %s428
        %s430 = smul.u32 16, %s24
        %s431 = smul.u32 16, %s24
        %p432 = scmp.lt.s32.totalorder %s431, 31
        %s433 = scalar_select %p432, %s431, 31
        %s434 = smul.addr %s433, 8
        %s435 = scalar_lea.vmem %s1, %s434
        %s436 = smul.u32 16, %s24
        %s437 = smul.u32 16, %s24
        %p438 = scmp.lt.s32.totalorder %s437, 31
        %s439 = scalar_select %p438, %s437, 31
        %s440 = smul.addr %s439, 8
        %s441 = scalar_lea.vmem %s2, %s440
        %s442 = smul.u32 16, %s24
        %s443 = smul.u32 16, %s24
        %p444 = scmp.lt.s32.totalorder %s443, 31
        %s445 = scalar_select %p444, %s443, 31
        %s446 = smul.addr %s445, 8
        %s447 = scalar_lea.vmem %s3, %s446
        %s448 = smul.u32 16, %s24
        %s449 = smul.u32 16, %s24
        %p450 = scmp.lt.s32.totalorder %s449, 31
        %s451 = scalar_select %p450, %s449, 31
        %s452 = smul.addr %s451, 8
        %s453 = scalar_lea.vmem %s10, %s452
        %s454 = smul.u32 16, %s24
        %p455 = scmp.eq.s32.totalorder %s24, 0
        // Predicated region
        $region61: #{tpu_custom_call.1} parent=59 // pred_check
          %p456 = pneg %p455
        $region62: #{tpu_custom_call.1} parent=59 // pred_check_branch
          %458 = sbr.rel (%p456) target = $region64
        $region63: #{tpu_custom_call.1} parent=59 // pred_region
          %vm459 = vcmask 0
          %460 = vst.msk [vmem:[#allocation2] sm:$0x1] %vm459, 0.0
        $region64: #{tpu_custom_call.1} parent=59 // pred_fallthru
          _
        %v461 = vld [vmem:[%s429] sm:$0xff]
        %v462 = vld [vmem:[%s429 + $0x8] sm:$0xff]
        %v463 = vld [vmem:[%s429 + $0x10] sm:$0xff]
        %v464 = vld [vmem:[%s429 + $0x18] sm:$0xff]
        %v465 = vld [vmem:[%s429 + $0x20] sm:$0xff]
        %v466 = vld [vmem:[%s429 + $0x28] sm:$0xff]
        %v467 = vld [vmem:[%s429 + $0x30] sm:$0xff]
        %v468 = vld [vmem:[%s429 + $0x38] sm:$0xff]
        %v469 = vld [vmem:[%s429 + $0x40] sm:$0xff]
        %v470 = vld [vmem:[%s429 + $0x48] sm:$0xff]
        %v471 = vld [vmem:[%s429 + $0x50] sm:$0xff]
        %v472 = vld [vmem:[%s429 + $0x58] sm:$0xff]
        %v473 = vld [vmem:[%s429 + $0x60] sm:$0xff]
        %v474 = vld [vmem:[%s429 + $0x68] sm:$0xff]
        %v475 = vld [vmem:[%s429 + $0x70] sm:$0xff]
        %v476 = vld [vmem:[%s429 + $0x78] sm:$0xff]
        %v477 = vld [vmem:[%s4] sm:$0xff]
        %v478 = vld [vmem:[%s4 + $0x8] sm:$0xff]
        %v479 = vld [vmem:[%s5] sm:$0x1]
        %v481 = vperm.slane %v479, 0
        %vm483 = vcmask 130048
        %v485 = vsel %vm483, %v461, 0
        %v488 = vsel %vm483, %v462, 0
        %v491 = vsel %vm483, %v463, 0
        %v494 = vsel %vm483, %v464, 0
        %v497 = vsel %vm483, %v465, 0
        %v500 = vsel %vm483, %v466, 0
        %v503 = vsel %vm483, %v467, 0
        %v506 = vsel %vm483, %v468, 0
        %v509 = vsel %vm483, %v469, 0
        %v512 = vsel %vm483, %v470, 0
        %v515 = vsel %vm483, %v471, 0
        %v518 = vsel %vm483, %v472, 0
        %v521 = vsel %vm483, %v473, 0
        %v524 = vsel %vm483, %v474, 0
        %v527 = vsel %vm483, %v475, 0
        %v530 = vsel %vm483, %v476, 0
        %532 = vmatpush.msra.mxu0 0.0
        %533 = vmatpush.msra.mxu0 0.0
        %534 = vmatpush.msra.mxu0 0.0
        %535 = vmatpush.msra.mxu0 0.0
        %536 = vmatpush.msra.mxu0 0.0
        %537 = vmatpush.msra.mxu0 0.0
        %538 = vmatpush.msra.mxu0 0.0
        %539 = vmatpush.msra.mxu0 0.0
        %540 = vmatpush.msra.mxu0 0.0
        %541 = vmatpush.msra.mxu0 0.0
        %542 = vmatpush.msra.mxu0 0.0
        %543 = vmatpush.msra.mxu0 0.0
        %544 = vmatpush.msra.mxu0 0.0
        %545 = vmatpush.msra.mxu0 0.0
        %546 = vmatpush.msra.mxu0 %v478
        %547 = vmatpush.msra.mxu0 %v477
        %548 = vmatmul.f32.gmra.mxu0 %v485
        %v549 = vpop.f32.mrf.mxu0
        %v550 = vadd.f32 %v481, %v549
        %551 = vmatmul.f32.gmra.mxu0 %v488
        %v552 = vpop.f32.mrf.mxu0
        %v553 = vadd.f32 %v481, %v552
        %554 = vmatmul.f32.gmra.mxu0 %v491
        %v555 = vpop.f32.mrf.mxu0
        %v556 = vadd.f32 %v481, %v555
        %557 = vmatmul.f32.gmra.mxu0 %v494
        %v558 = vpop.f32.mrf.mxu0
        %v559 = vadd.f32 %v481, %v558
        %560 = vmatmul.f32.gmra.mxu0 %v497
        %v561 = vpop.f32.mrf.mxu0
        %v562 = vadd.f32 %v481, %v561
        %563 = vmatmul.f32.gmra.mxu0 %v500
        %v564 = vpop.f32.mrf.mxu0
        %v565 = vadd.f32 %v481, %v564
        %566 = vmatmul.f32.gmra.mxu0 %v503
        %v567 = vpop.f32.mrf.mxu0
        %v568 = vadd.f32 %v481, %v567
        %569 = vmatmul.f32.gmra.mxu0 %v506
        %v570 = vpop.f32.mrf.mxu0
        %v571 = vadd.f32 %v481, %v570
        %572 = vmatmul.f32.gmra.mxu0 %v509
        %v573 = vpop.f32.mrf.mxu0
        %v574 = vadd.f32 %v481, %v573
        %575 = vmatmul.f32.gmra.mxu0 %v512
        %v576 = vpop.f32.mrf.mxu0
        %v577 = vadd.f32 %v481, %v576
        %578 = vmatmul.f32.gmra.mxu0 %v515
        %v579 = vpop.f32.mrf.mxu0
        %v580 = vadd.f32 %v481, %v579
        %581 = vmatmul.f32.gmra.mxu0 %v518
        %v582 = vpop.f32.mrf.mxu0
        %v583 = vadd.f32 %v481, %v582
        %584 = vmatmul.f32.gmra.mxu0 %v521
        %v585 = vpop.f32.mrf.mxu0
        %v586 = vadd.f32 %v481, %v585
        %587 = vmatmul.f32.gmra.mxu0 %v524
        %v588 = vpop.f32.mrf.mxu0
        %v589 = vadd.f32 %v481, %v588
        %590 = vmatmul.f32.gmra.mxu0 %v527
        %v591 = vpop.f32.mrf.mxu0
        %v592 = vadd.f32 %v481, %v591
        %593 = vmatmul.f32.gmra.mxu0 %v530
        %v594 = vpop.f32.mrf.mxu0
        %v595 = vadd.f32 %v481, %v594
        %596 = vdwg.mxu0
        %vm597 = vcmask 261120
        %v598 = vsel %vm597, %v550, 0.0
        %599 = vadd.xlane.f32.xlu0 %v598
        %v600 = vpop.xlane.xlu0 %599
        %v601 = vsel %vm597, %v553, 0.0
        %602 = vadd.xlane.f32.xlu0 %v601
        %v603 = vpop.xlane.xlu0 %602
        %v604 = vsel %vm597, %v556, 0.0
        %605 = vadd.xlane.f32.xlu0 %v604
        %v606 = vpop.xlane.xlu0 %605
        %v607 = vsel %vm597, %v559, 0.0
        %608 = vadd.xlane.f32.xlu0 %v607
        %v609 = vpop.xlane.xlu0 %608
        %v610 = vsel %vm597, %v562, 0.0
        %611 = vadd.xlane.f32.xlu0 %v610
        %v612 = vpop.xlane.xlu0 %611
        %v613 = vsel %vm597, %v565, 0.0
        %614 = vadd.xlane.f32.xlu0 %v613
        %v615 = vpop.xlane.xlu0 %614
        %v616 = vsel %vm597, %v568, 0.0
        %617 = vadd.xlane.f32.xlu0 %v616
        %v618 = vpop.xlane.xlu0 %617
        %v619 = vsel %vm597, %v571, 0.0
        %620 = vadd.xlane.f32.xlu0 %v619
        %v621 = vpop.xlane.xlu0 %620
        %v622 = vsel %vm597, %v574, 0.0
        %623 = vadd.xlane.f32.xlu0 %v622
        %v624 = vpop.xlane.xlu0 %623
        %v625 = vsel %vm597, %v577, 0.0
        %626 = vadd.xlane.f32.xlu0 %v625
        %v627 = vpop.xlane.xlu0 %626
        %v628 = vsel %vm597, %v580, 0.0
        %629 = vadd.xlane.f32.xlu0 %v628
        %v630 = vpop.xlane.xlu0 %629
        %v631 = vsel %vm597, %v583, 0.0
        %632 = vadd.xlane.f32.xlu0 %v631
        %v633 = vpop.xlane.xlu0 %632
        %v634 = vsel %vm597, %v586, 0.0
        %635 = vadd.xlane.f32.xlu0 %v634
        %v636 = vpop.xlane.xlu0 %635
        %v637 = vsel %vm597, %v589, 0.0
        %638 = vadd.xlane.f32.xlu0 %v637
        %v639 = vpop.xlane.xlu0 %638
        %v640 = vsel %vm597, %v592, 0.0
        %641 = vadd.xlane.f32.xlu0 %v640
        %v642 = vpop.xlane.xlu0 %641
        %v643 = vsel %vm597, %v595, 0.0
        %644 = vadd.xlane.f32.xlu0 %v643
        %v645 = vpop.xlane.xlu0 %644
        %v646 = vrcp.pop 32.0
        %v647 = vmul.f32 32.0, %v646
        %v648 = vsub.f32 1.0, %v647
        %v649 = vmul.f32 %v646, %v648
        %v650 = vadd.f32 %v646, %v649
        %vm651 = vweird.f32 %v646
        %v652 = vsel %vm651, %v646, %v650
        %v653 = vmul.f32 %v600, %v652
        %v654 = vmul.f32 %v603, %v652
        %v655 = vmul.f32 %v606, %v652
        %v656 = vmul.f32 %v609, %v652
        %v657 = vmul.f32 %v612, %v652
        %v658 = vmul.f32 %v615, %v652
        %v659 = vmul.f32 %v618, %v652
        %v660 = vmul.f32 %v621, %v652
        %v661 = vmul.f32 %v624, %v652
        %v662 = vmul.f32 %v627, %v652
        %v663 = vmul.f32 %v630, %v652
        %v664 = vmul.f32 %v633, %v652
        %v665 = vmul.f32 %v636, %v652
        %v666 = vmul.f32 %v639, %v652
        %v667 = vmul.f32 %v642, %v652
        %v668 = vmul.f32 %v645, %v652
        %v669 = vsub.f32 %v550, %v653
        %v670 = vsub.f32 %v553, %v654
        %v671 = vsub.f32 %v556, %v655
        %v672 = vsub.f32 %v559, %v656
        %v673 = vsub.f32 %v562, %v657
        %v674 = vsub.f32 %v565, %v658
        %v675 = vsub.f32 %v568, %v659
        %v676 = vsub.f32 %v571, %v660
        %v677 = vsub.f32 %v574, %v661
        %v678 = vsub.f32 %v577, %v662
        %v679 = vsub.f32 %v580, %v663
        %v680 = vsub.f32 %v583, %v664
        %v681 = vsub.f32 %v586, %v665
        %v682 = vsub.f32 %v589, %v666
        %v683 = vsub.f32 %v592, %v667
        %v684 = vsub.f32 %v595, %v668
        %v685 = vmul.f32 %v669, %v669
        %v686 = vmul.f32 %v670, %v670
        %v687 = vmul.f32 %v671, %v671
        %v688 = vmul.f32 %v672, %v672
        %v689 = vmul.f32 %v673, %v673
        %v690 = vmul.f32 %v674, %v674
        %v691 = vmul.f32 %v675, %v675
        %v692 = vmul.f32 %v676, %v676
        %v693 = vmul.f32 %v677, %v677
        %v694 = vmul.f32 %v678, %v678
        %v695 = vmul.f32 %v679, %v679
        %v696 = vmul.f32 %v680, %v680
        %v697 = vmul.f32 %v681, %v681
        %v698 = vmul.f32 %v682, %v682
        %v699 = vmul.f32 %v683, %v683
        %v700 = vmul.f32 %v684, %v684
        %v701 = vsel %vm597, %v685, 0.0
        %702 = vadd.xlane.f32.xlu0 %v701
        %v703 = vpop.xlane.xlu0 %702
        %v704 = vsel %vm597, %v686, 0.0
        %705 = vadd.xlane.f32.xlu0 %v704
        %v706 = vpop.xlane.xlu0 %705
        %v707 = vsel %vm597, %v687, 0.0
        %708 = vadd.xlane.f32.xlu0 %v707
        %v709 = vpop.xlane.xlu0 %708
        %v710 = vsel %vm597, %v688, 0.0
        %711 = vadd.xlane.f32.xlu0 %v710
        %v712 = vpop.xlane.xlu0 %711
        %v713 = vsel %vm597, %v689, 0.0
        %714 = vadd.xlane.f32.xlu0 %v713
        %v715 = vpop.xlane.xlu0 %714
        %v716 = vsel %vm597, %v690, 0.0
        %717 = vadd.xlane.f32.xlu0 %v716
        %v718 = vpop.xlane.xlu0 %717
        %v719 = vsel %vm597, %v691, 0.0
        %720 = vadd.xlane.f32.xlu0 %v719
        %v721 = vpop.xlane.xlu0 %720
        %v722 = vsel %vm597, %v692, 0.0
        %723 = vadd.xlane.f32.xlu0 %v722
        %v724 = vpop.xlane.xlu0 %723
        %v725 = vsel %vm597, %v693, 0.0
        %726 = vadd.xlane.f32.xlu0 %v725
        %v727 = vpop.xlane.xlu0 %726
        %v728 = vsel %vm597, %v694, 0.0
        %729 = vadd.xlane.f32.xlu0 %v728
        %v730 = vpop.xlane.xlu0 %729
        %v731 = vsel %vm597, %v695, 0.0
        %732 = vadd.xlane.f32.xlu0 %v731
        %v733 = vpop.xlane.xlu0 %732
        %v734 = vsel %vm597, %v696, 0.0
        %735 = vadd.xlane.f32.xlu0 %v734
        %v736 = vpop.xlane.xlu0 %735
        %v737 = vsel %vm597, %v697, 0.0
        %738 = vadd.xlane.f32.xlu0 %v737
        %v739 = vpop.xlane.xlu0 %738
        %v740 = vsel %vm597, %v698, 0.0
        %741 = vadd.xlane.f32.xlu0 %v740
        %v742 = vpop.xlane.xlu0 %741
        %v743 = vsel %vm597, %v699, 0.0
        %744 = vadd.xlane.f32.xlu0 %v743
        %v745 = vpop.xlane.xlu0 %744
        %v746 = vsel %vm597, %v700, 0.0
        %747 = vadd.xlane.f32.xlu0 %v746
        %v748 = vpop.xlane.xlu0 %747
        %v749 = vmul.f32 %v703, %v652
        %v750 = vmul.f32 %v706, %v652
        %v751 = vmul.f32 %v709, %v652
        %v752 = vmul.f32 %v712, %v652
        %v753 = vmul.f32 %v715, %v652
        %v754 = vmul.f32 %v718, %v652
        %v755 = vmul.f32 %v721, %v652
        %v756 = vmul.f32 %v724, %v652
        %v757 = vmul.f32 %v727, %v652
        %v758 = vmul.f32 %v730, %v652
        %v759 = vmul.f32 %v733, %v652
        %v760 = vmul.f32 %v736, %v652
        %v761 = vmul.f32 %v739, %v652
        %v762 = vmul.f32 %v742, %v652
        %v763 = vmul.f32 %v745, %v652
        %v764 = vmul.f32 %v748, %v652
        %v765 = vadd.f32 %v749, 1e-05
        %v766 = vadd.f32 %v750, 1e-05
        %v767 = vadd.f32 %v751, 1e-05
        %v768 = vadd.f32 %v752, 1e-05
        %v769 = vadd.f32 %v753, 1e-05
        %v770 = vadd.f32 %v754, 1e-05
        %v771 = vadd.f32 %v755, 1e-05
        %v772 = vadd.f32 %v756, 1e-05
        %v773 = vadd.f32 %v757, 1e-05
        %v774 = vadd.f32 %v758, 1e-05
        %v775 = vadd.f32 %v759, 1e-05
        %v776 = vadd.f32 %v760, 1e-05
        %v777 = vadd.f32 %v761, 1e-05
        %v778 = vadd.f32 %v762, 1e-05
        %v779 = vadd.f32 %v763, 1e-05
        %v780 = vadd.f32 %v764, 1e-05
        %v781 = vrsqrt.pop %v765
        %v782 = vmul.f32 %v781, %v765
        %v783 = vmul.f32 %v782, %v781
        %v784 = vmul.f32 0.5, %v783
        %v785 = vsub.f32 1.5, %v784
        %v786 = vmul.f32 %v781, %v785
        %vm787 = vweird.f32 %v765
        %vm788 = vweird.f32 %v781
        %vm789 = vmor %vm787, %vm788
        %v790 = vsel %vm789, %v781, %v786
        %v791 = vrsqrt.pop %v766
        %v792 = vmul.f32 %v791, %v766
        %v793 = vmul.f32 %v792, %v791
        %v794 = vmul.f32 0.5, %v793
        %v795 = vsub.f32 1.5, %v794
        %v796 = vmul.f32 %v791, %v795
        %vm797 = vweird.f32 %v766
        %vm798 = vweird.f32 %v791
        %vm799 = vmor %vm797, %vm798
        %v800 = vsel %vm799, %v791, %v796
        %v801 = vrsqrt.pop %v767
        %v802 = vmul.f32 %v801, %v767
        %v803 = vmul.f32 %v802, %v801
        %v804 = vmul.f32 0.5, %v803
        %v805 = vsub.f32 1.5, %v804
        %v806 = vmul.f32 %v801, %v805
        %vm807 = vweird.f32 %v767
        %vm808 = vweird.f32 %v801
        %vm809 = vmor %vm807, %vm808
        %v810 = vsel %vm809, %v801, %v806
        %v811 = vrsqrt.pop %v768
        %v812 = vmul.f32 %v811, %v768
        %v813 = vmul.f32 %v812, %v811
        %v814 = vmul.f32 0.5, %v813
        %v815 = vsub.f32 1.5, %v814
        %v816 = vmul.f32 %v811, %v815
        %vm817 = vweird.f32 %v768
        %vm818 = vweird.f32 %v811
        %vm819 = vmor %vm817, %vm818
        %v820 = vsel %vm819, %v811, %v816
        %v821 = vrsqrt.pop %v769
        %v822 = vmul.f32 %v821, %v769
        %v823 = vmul.f32 %v822, %v821
        %v824 = vmul.f32 0.5, %v823
        %v825 = vsub.f32 1.5, %v824
        %v826 = vmul.f32 %v821, %v825
        %vm827 = vweird.f32 %v769
        %vm828 = vweird.f32 %v821
        %vm829 = vmor %vm827, %vm828
        %v830 = vsel %vm829, %v821, %v826
        %v831 = vrsqrt.pop %v770
        %v832 = vmul.f32 %v831, %v770
        %v833 = vmul.f32 %v832, %v831
        %v834 = vmul.f32 0.5, %v833
        %v835 = vsub.f32 1.5, %v834
        %v836 = vmul.f32 %v831, %v835
        %vm837 = vweird.f32 %v770
        %vm838 = vweird.f32 %v831
        %vm839 = vmor %vm837, %vm838
        %v840 = vsel %vm839, %v831, %v836
        %v841 = vrsqrt.pop %v771
        %v842 = vmul.f32 %v841, %v771
        %v843 = vmul.f32 %v842, %v841
        %v844 = vmul.f32 0.5, %v843
        %v845 = vsub.f32 1.5, %v844
        %v846 = vmul.f32 %v841, %v845
        %vm847 = vweird.f32 %v771
        %vm848 = vweird.f32 %v841
        %vm849 = vmor %vm847, %vm848
        %v850 = vsel %vm849, %v841, %v846
        %v851 = vrsqrt.pop %v772
        %v852 = vmul.f32 %v851, %v772
        %v853 = vmul.f32 %v852, %v851
        %v854 = vmul.f32 0.5, %v853
        %v855 = vsub.f32 1.5, %v854
        %v856 = vmul.f32 %v851, %v855
        %vm857 = vweird.f32 %v772
        %vm858 = vweird.f32 %v851
        %vm859 = vmor %vm857, %vm858
        %v860 = vsel %vm859, %v851, %v856
        %v861 = vrsqrt.pop %v773
        %v862 = vmul.f32 %v861, %v773
        %v863 = vmul.f32 %v862, %v861
        %v864 = vmul.f32 0.5, %v863
        %v865 = vsub.f32 1.5, %v864
        %v866 = vmul.f32 %v861, %v865
        %vm867 = vweird.f32 %v773
        %vm868 = vweird.f32 %v861
        %vm869 = vmor %vm867, %vm868
        %v870 = vsel %vm869, %v861, %v866
        %v871 = vrsqrt.pop %v774
        %v872 = vmul.f32 %v871, %v774
        %v873 = vmul.f32 %v872, %v871
        %v874 = vmul.f32 0.5, %v873
        %v875 = vsub.f32 1.5, %v874
        %v876 = vmul.f32 %v871, %v875
        %vm877 = vweird.f32 %v774
        %vm878 = vweird.f32 %v871
        %vm879 = vmor %vm877, %vm878
        %v880 = vsel %vm879, %v871, %v876
        %v881 = vrsqrt.pop %v775
        %v882 = vmul.f32 %v881, %v775
        %v883 = vmul.f32 %v882, %v881
        %v884 = vmul.f32 0.5, %v883
        %v885 = vsub.f32 1.5, %v884
        %v886 = vmul.f32 %v881, %v885
        %vm887 = vweird.f32 %v775
        %vm888 = vweird.f32 %v881
        %vm889 = vmor %vm887, %vm888
        %v890 = vsel %vm889, %v881, %v886
        %v891 = vrsqrt.pop %v776
        %v892 = vmul.f32 %v891, %v776
        %v893 = vmul.f32 %v892, %v891
        %v894 = vmul.f32 0.5, %v893
        %v895 = vsub.f32 1.5, %v894
        %v896 = vmul.f32 %v891, %v895
        %vm897 = vweird.f32 %v776
        %vm898 = vweird.f32 %v891
        %vm899 = vmor %vm897, %vm898
        %v900 = vsel %vm899, %v891, %v896
        %v901 = vrsqrt.pop %v777
        %v902 = vmul.f32 %v901, %v777
        %v903 = vmul.f32 %v902, %v901
        %v904 = vmul.f32 0.5, %v903
        %v905 = vsub.f32 1.5, %v904
        %v906 = vmul.f32 %v901, %v905
        %vm907 = vweird.f32 %v777
        %vm908 = vweird.f32 %v901
        %vm909 = vmor %vm907, %vm908
        %v910 = vsel %vm909, %v901, %v906
        %v911 = vrsqrt.pop %v778
        %v912 = vmul.f32 %v911, %v778
        %v913 = vmul.f32 %v912, %v911
        %v914 = vmul.f32 0.5, %v913
        %v915 = vsub.f32 1.5, %v914
        %v916 = vmul.f32 %v911, %v915
        %vm917 = vweird.f32 %v778
        %vm918 = vweird.f32 %v911
        %vm919 = vmor %vm917, %vm918
        %v920 = vsel %vm919, %v911, %v916
        %v921 = vrsqrt.pop %v779
        %v922 = vmul.f32 %v921, %v779
        %v923 = vmul.f32 %v922, %v921
        %v924 = vmul.f32 0.5, %v923
        %v925 = vsub.f32 1.5, %v924
        %v926 = vmul.f32 %v921, %v925
        %vm927 = vweird.f32 %v779
        %vm928 = vweird.f32 %v921
        %vm929 = vmor %vm927, %vm928
        %v930 = vsel %vm929, %v921, %v926
        %v931 = vrsqrt.pop %v780
        %v932 = vmul.f32 %v931, %v780
        %v933 = vmul.f32 %v932, %v931
        %v934 = vmul.f32 0.5, %v933
        %v935 = vsub.f32 1.5, %v934
        %v936 = vmul.f32 %v931, %v935
        %vm937 = vweird.f32 %v780
        %vm938 = vweird.f32 %v931
        %vm939 = vmor %vm937, %vm938
        %v940 = vsel %vm939, %v931, %v936
        %v941 = vmul.f32 %v669, %v790
        %v942 = vmul.f32 %v670, %v800
        %v943 = vmul.f32 %v671, %v810
        %v944 = vmul.f32 %v672, %v820
        %v945 = vmul.f32 %v673, %v830
        %v946 = vmul.f32 %v674, %v840
        %v947 = vmul.f32 %v675, %v850
        %v948 = vmul.f32 %v676, %v860
        %v949 = vmul.f32 %v677, %v870
        %v950 = vmul.f32 %v678, %v880
        %v951 = vmul.f32 %v679, %v890
        %v952 = vmul.f32 %v680, %v900
        %v953 = vmul.f32 %v681, %v910
        %v954 = vmul.f32 %v682, %v920
        %v955 = vmul.f32 %v683, %v930
        %v956 = vmul.f32 %v684, %v940
        %v957 = vld [vmem:[%s6] sm:$0x1]
        %v959 = vperm.slane %v957, 0
        %v961 = vmul.f32 %v941, %v959
        %v962 = vmul.f32 %v942, %v959
        %v963 = vmul.f32 %v943, %v959
        %v964 = vmul.f32 %v944, %v959
        %v965 = vmul.f32 %v945, %v959
        %v966 = vmul.f32 %v946, %v959
        %v967 = vmul.f32 %v947, %v959
        %v968 = vmul.f32 %v948, %v959
        %v969 = vmul.f32 %v949, %v959
        %v970 = vmul.f32 %v950, %v959
        %v971 = vmul.f32 %v951, %v959
        %v972 = vmul.f32 %v952, %v959
        %v973 = vmul.f32 %v953, %v959
        %v974 = vmul.f32 %v954, %v959
        %v975 = vmul.f32 %v955, %v959
        %v976 = vmul.f32 %v956, %v959
        %v977 = vld [vmem:[%s7] sm:$0x1]
        %v979 = vperm.slane %v977, 0
        %v981 = vadd.f32 %v961, %v979
        %v982 = vadd.f32 %v962, %v979
        %v983 = vadd.f32 %v963, %v979
        %v984 = vadd.f32 %v964, %v979
        %v985 = vadd.f32 %v965, %v979
        %v986 = vadd.f32 %v966, %v979
        %v987 = vadd.f32 %v967, %v979
        %v988 = vadd.f32 %v968, %v979
        %v989 = vadd.f32 %v969, %v979
        %v990 = vadd.f32 %v970, %v979
        %v991 = vadd.f32 %v971, %v979
        %v992 = vadd.f32 %v972, %v979
        %v993 = vadd.f32 %v973, %v979
        %v994 = vadd.f32 %v974, %v979
        %v995 = vadd.f32 %v975, %v979
        %v996 = vadd.f32 %v976, %v979
        %v997 = vmax.f32 %v981, 0.0
        %v998 = vmax.f32 %v982, 0.0
        %v999 = vmax.f32 %v983, 0.0
        %v1000 = vmax.f32 %v984, 0.0
        %v1001 = vmax.f32 %v985, 0.0
        %v1002 = vmax.f32 %v986, 0.0
        %v1003 = vmax.f32 %v987, 0.0
        %v1004 = vmax.f32 %v988, 0.0
        %v1005 = vmax.f32 %v989, 0.0
        %v1006 = vmax.f32 %v990, 0.0
        %v1007 = vmax.f32 %v991, 0.0
        %v1008 = vmax.f32 %v992, 0.0
        %v1009 = vmax.f32 %v993, 0.0
        %v1010 = vmax.f32 %v994, 0.0
        %v1011 = vmax.f32 %v995, 0.0
        %v1012 = vmax.f32 %v996, 0.0
        %v1013 = vld [vmem:[%s8] sm:$0xff]
        %v1014 = vld [vmem:[%s8 + $0x8] sm:$0xff]
        %v1015 = vld [vmem:[%s8 + $0x10] sm:$0xff]
        %v1016 = vld [vmem:[%s8 + $0x18] sm:$0xff]
        %v1017 = vld [vmem:[%s9] sm:$0x1]
        %v1019 = vperm.slane %v1017, 0
        %v1022 = vsel %vm597, %v997, 0
        %v1025 = vsel %vm597, %v998, 0
        %v1028 = vsel %vm597, %v999, 0
        %v1031 = vsel %vm597, %v1000, 0
        %v1034 = vsel %vm597, %v1001, 0
        %v1037 = vsel %vm597, %v1002, 0
        %v1040 = vsel %vm597, %v1003, 0
        %v1043 = vsel %vm597, %v1004, 0
        %v1046 = vsel %vm597, %v1005, 0
        %v1049 = vsel %vm597, %v1006, 0
        %v1052 = vsel %vm597, %v1007, 0
        %v1055 = vsel %vm597, %v1008, 0
        %v1058 = vsel %vm597, %v1009, 0
        %v1061 = vsel %vm597, %v1010, 0
        %v1064 = vsel %vm597, %v1011, 0
        %v1067 = vsel %vm597, %v1012, 0
        %1069 = vmatpush.msra.mxu0 0.0
        %1070 = vmatpush.msra.mxu0 0.0
        %1071 = vmatpush.msra.mxu0 0.0
        %1072 = vmatpush.msra.mxu0 0.0
        %1073 = vmatpush.msra.mxu0 0.0
        %1074 = vmatpush.msra.mxu0 0.0
        %1075 = vmatpush.msra.mxu0 0.0
        %1076 = vmatpush.msra.mxu0 0.0
        %1077 = vmatpush.msra.mxu0 0.0
        %1078 = vmatpush.msra.mxu0 0.0
        %1079 = vmatpush.msra.mxu0 0.0
        %1080 = vmatpush.msra.mxu0 0.0
        %1081 = vmatpush.msra.mxu0 %v1016
        %1082 = vmatpush.msra.mxu0 %v1015
        %1083 = vmatpush.msra.mxu0 %v1014
        %1084 = vmatpush.msra.mxu0 %v1013
        %1085 = vmatmul.f32.gmra.mxu0 %v1022
        %v1086 = vpop.f32.mrf.mxu0
        %v1087 = vadd.f32 %v1019, %v1086
        %1088 = vmatmul.f32.gmra.mxu0 %v1025
        %v1089 = vpop.f32.mrf.mxu0
        %v1090 = vadd.f32 %v1019, %v1089
        %1091 = vmatmul.f32.gmra.mxu0 %v1028
        %v1092 = vpop.f32.mrf.mxu0
        %v1093 = vadd.f32 %v1019, %v1092
        %1094 = vmatmul.f32.gmra.mxu0 %v1031
        %v1095 = vpop.f32.mrf.mxu0
        %v1096 = vadd.f32 %v1019, %v1095
        %1097 = vmatmul.f32.gmra.mxu0 %v1034
        %v1098 = vpop.f32.mrf.mxu0
        %v1099 = vadd.f32 %v1019, %v1098
        %1100 = vmatmul.f32.gmra.mxu0 %v1037
        %v1101 = vpop.f32.mrf.mxu0
        %v1102 = vadd.f32 %v1019, %v1101
        %1103 = vmatmul.f32.gmra.mxu0 %v1040
        %v1104 = vpop.f32.mrf.mxu0
        %v1105 = vadd.f32 %v1019, %v1104
        %1106 = vmatmul.f32.gmra.mxu0 %v1043
        %v1107 = vpop.f32.mrf.mxu0
        %v1108 = vadd.f32 %v1019, %v1107
        %1109 = vmatmul.f32.gmra.mxu0 %v1046
        %v1110 = vpop.f32.mrf.mxu0
        %v1111 = vadd.f32 %v1019, %v1110
        %1112 = vmatmul.f32.gmra.mxu0 %v1049
        %v1113 = vpop.f32.mrf.mxu0
        %v1114 = vadd.f32 %v1019, %v1113
        %1115 = vmatmul.f32.gmra.mxu0 %v1052
        %v1116 = vpop.f32.mrf.mxu0
        %v1117 = vadd.f32 %v1019, %v1116
        %1118 = vmatmul.f32.gmra.mxu0 %v1055
        %v1119 = vpop.f32.mrf.mxu0
        %v1120 = vadd.f32 %v1019, %v1119
        %1121 = vmatmul.f32.gmra.mxu0 %v1058
        %v1122 = vpop.f32.mrf.mxu0
        %v1123 = vadd.f32 %v1019, %v1122
        %1124 = vmatmul.f32.gmra.mxu0 %v1061
        %v1125 = vpop.f32.mrf.mxu0
        %v1126 = vadd.f32 %v1019, %v1125
        %1127 = vmatmul.f32.gmra.mxu0 %v1064
        %v1128 = vpop.f32.mrf.mxu0
        %v1129 = vadd.f32 %v1019, %v1128
        %1130 = vmatmul.f32.gmra.mxu0 %v1067
        %v1131 = vpop.f32.mrf.mxu0
        %v1132 = vadd.f32 %v1019, %v1131
        %1133 = vdwg.mxu0
        %v1134 = vmax.f32 %v1087, -20.0
        %v1135 = vmax.f32 %v1090, -20.0
        %v1136 = vmax.f32 %v1093, -20.0
        %v1137 = vmax.f32 %v1096, -20.0
        %v1138 = vmax.f32 %v1099, -20.0
        %v1139 = vmax.f32 %v1102, -20.0
        %v1140 = vmax.f32 %v1105, -20.0
        %v1141 = vmax.f32 %v1108, -20.0
        %v1142 = vmax.f32 %v1111, -20.0
        %v1143 = vmax.f32 %v1114, -20.0
        %v1144 = vmax.f32 %v1117, -20.0
        %v1145 = vmax.f32 %v1120, -20.0
        %v1146 = vmax.f32 %v1123, -20.0
        %v1147 = vmax.f32 %v1126, -20.0
        %v1148 = vmax.f32 %v1129, -20.0
        %v1149 = vmax.f32 %v1132, -20.0
        %v1150 = vmin.f32 %v1134, 2.0
        %v1151 = vmin.f32 %v1135, 2.0
        %v1152 = vmin.f32 %v1136, 2.0
        %v1153 = vmin.f32 %v1137, 2.0
        %v1154 = vmin.f32 %v1138, 2.0
        %v1155 = vmin.f32 %v1139, 2.0
        %v1156 = vmin.f32 %v1140, 2.0
        %v1157 = vmin.f32 %v1141, 2.0
        %v1158 = vmin.f32 %v1142, 2.0
        %v1159 = vmin.f32 %v1143, 2.0
        %v1160 = vmin.f32 %v1144, 2.0
        %v1161 = vmin.f32 %v1145, 2.0
        %v1162 = vmin.f32 %v1146, 2.0
        %v1163 = vmin.f32 %v1147, 2.0
        %v1164 = vmin.f32 %v1148, 2.0
        %v1165 = vmin.f32 %v1149, 2.0
        %v1166 = vmul.f32 %v1150, 1.442695
        %v1167 = vpow.pop %v1166
        %v1168 = vmul.f32 %v1151, 1.442695
        %v1169 = vpow.pop %v1168
        %v1170 = vmul.f32 %v1152, 1.442695
        %v1171 = vpow.pop %v1170
        %v1172 = vmul.f32 %v1153, 1.442695
        %v1173 = vpow.pop %v1172
        %v1174 = vmul.f32 %v1154, 1.442695
        %v1175 = vpow.pop %v1174
        %v1176 = vmul.f32 %v1155, 1.442695
        %v1177 = vpow.pop %v1176
        %v1178 = vmul.f32 %v1156, 1.442695
        %v1179 = vpow.pop %v1178
        %v1180 = vmul.f32 %v1157, 1.442695
        %v1181 = vpow.pop %v1180
        %v1182 = vmul.f32 %v1158, 1.442695
        %v1183 = vpow.pop %v1182
        %v1184 = vmul.f32 %v1159, 1.442695
        %v1185 = vpow.pop %v1184
        %v1186 = vmul.f32 %v1160, 1.442695
        %v1187 = vpow.pop %v1186
        %v1188 = vmul.f32 %v1161, 1.442695
        %v1189 = vpow.pop %v1188
        %v1190 = vmul.f32 %v1162, 1.442695
        %v1191 = vpow.pop %v1190
        %v1192 = vmul.f32 %v1163, 1.442695
        %v1193 = vpow.pop %v1192
        %v1194 = vmul.f32 %v1164, 1.442695
        %v1195 = vpow.pop %v1194
        %v1196 = vmul.f32 %v1165, 1.442695
        %v1197 = vpow.pop %v1196
        %vm1198 = vcmask 31744
        %1199 = vst.msk [vmem:[%s453] sm:$0xff] %vm1198, %v1087
        %1200 = vst.msk [vmem:[%s453 + $0x8] sm:$0xff] %vm1198, %v1090
        %1201 = vst.msk [vmem:[%s453 + $0x10] sm:$0xff] %vm1198, %v1093
        %1202 = vst.msk [vmem:[%s453 + $0x18] sm:$0xff] %vm1198, %v1096
        %1203 = vst.msk [vmem:[%s453 + $0x20] sm:$0xff] %vm1198, %v1099
        %1204 = vst.msk [vmem:[%s453 + $0x28] sm:$0xff] %vm1198, %v1102
        %1205 = vst.msk [vmem:[%s453 + $0x30] sm:$0xff] %vm1198, %v1105
        %1206 = vst.msk [vmem:[%s453 + $0x38] sm:$0xff] %vm1198, %v1108
        %1207 = vst.msk [vmem:[%s453 + $0x40] sm:$0xff] %vm1198, %v1111
        %1208 = vst.msk [vmem:[%s453 + $0x48] sm:$0xff] %vm1198, %v1114
        %1209 = vst.msk [vmem:[%s453 + $0x50] sm:$0xff] %vm1198, %v1117
        %1210 = vst.msk [vmem:[%s453 + $0x58] sm:$0xff] %vm1198, %v1120
        %1211 = vst.msk [vmem:[%s453 + $0x60] sm:$0xff] %vm1198, %v1123
        %1212 = vst.msk [vmem:[%s453 + $0x68] sm:$0xff] %vm1198, %v1126
        %1213 = vst.msk [vmem:[%s453 + $0x70] sm:$0xff] %vm1198, %v1129
        %1214 = vst.msk [vmem:[%s453 + $0x78] sm:$0xff] %vm1198, %v1132
        %vm1215 = vcmask 64544
        %1216 = vst.msk [vmem:[%s453] sm:$0xff] %vm1215, %v1167
        %1217 = vst.msk [vmem:[%s453 + $0x8] sm:$0xff] %vm1215, %v1169
        %1218 = vst.msk [vmem:[%s453 + $0x10] sm:$0xff] %vm1215, %v1171
        %1219 = vst.msk [vmem:[%s453 + $0x18] sm:$0xff] %vm1215, %v1173
        %1220 = vst.msk [vmem:[%s453 + $0x20] sm:$0xff] %vm1215, %v1175
        %1221 = vst.msk [vmem:[%s453 + $0x28] sm:$0xff] %vm1215, %v1177
        %1222 = vst.msk [vmem:[%s453 + $0x30] sm:$0xff] %vm1215, %v1179
        %1223 = vst.msk [vmem:[%s453 + $0x38] sm:$0xff] %vm1215, %v1181
        %1224 = vst.msk [vmem:[%s453 + $0x40] sm:$0xff] %vm1215, %v1183
        %1225 = vst.msk [vmem:[%s453 + $0x48] sm:$0xff] %vm1215, %v1185
        %1226 = vst.msk [vmem:[%s453 + $0x50] sm:$0xff] %vm1215, %v1187
        %1227 = vst.msk [vmem:[%s453 + $0x58] sm:$0xff] %vm1215, %v1189
        %1228 = vst.msk [vmem:[%s453 + $0x60] sm:$0xff] %vm1215, %v1191
        %1229 = vst.msk [vmem:[%s453 + $0x68] sm:$0xff] %vm1215, %v1193
        %1230 = vst.msk [vmem:[%s453 + $0x70] sm:$0xff] %vm1215, %v1195
        %1231 = vst.msk [vmem:[%s453 + $0x78] sm:$0xff] %vm1215, %v1197
        %v1232 = vmax.f32 %v1150, -13.815511
        %v1233 = vmax.f32 %v1151, -13.815511
        %v1234 = vmax.f32 %v1152, -13.815511
        %v1235 = vmax.f32 %v1153, -13.815511
        %v1236 = vmax.f32 %v1154, -13.815511
        %v1237 = vmax.f32 %v1155, -13.815511
        %v1238 = vmax.f32 %v1156, -13.815511
        %v1239 = vmax.f32 %v1157, -13.815511
        %v1240 = vmax.f32 %v1158, -13.815511
        %v1241 = vmax.f32 %v1159, -13.815511
        %v1242 = vmax.f32 %v1160, -13.815511
        %v1243 = vmax.f32 %v1161, -13.815511
        %v1244 = vmax.f32 %v1162, -13.815511
        %v1245 = vmax.f32 %v1163, -13.815511
        %v1246 = vmax.f32 %v1164, -13.815511
        %v1247 = vmax.f32 %v1165, -13.815511
        %v1248 = vsub.f32 0.0, %v1232
        %v1249 = vsub.f32 0.0, %v1233
        %v1250 = vsub.f32 0.0, %v1234
        %v1251 = vsub.f32 0.0, %v1235
        %v1252 = vsub.f32 0.0, %v1236
        %v1253 = vsub.f32 0.0, %v1237
        %v1254 = vsub.f32 0.0, %v1238
        %v1255 = vsub.f32 0.0, %v1239
        %v1256 = vsub.f32 0.0, %v1240
        %v1257 = vsub.f32 0.0, %v1241
        %v1258 = vsub.f32 0.0, %v1242
        %v1259 = vsub.f32 0.0, %v1243
        %v1260 = vsub.f32 0.0, %v1244
        %v1261 = vsub.f32 0.0, %v1245
        %v1262 = vsub.f32 0.0, %v1246
        %v1263 = vsub.f32 0.0, %v1247
        %v1264 = vmul.f32 %v1248, 1.442695
        %v1265 = vpow.pop %v1264
        %v1266 = vmul.f32 %v1249, 1.442695
        %v1267 = vpow.pop %v1266
        %v1268 = vmul.f32 %v1250, 1.442695
        %v1269 = vpow.pop %v1268
        %v1270 = vmul.f32 %v1251, 1.442695
        %v1271 = vpow.pop %v1270
        %v1272 = vmul.f32 %v1252, 1.442695
        %v1273 = vpow.pop %v1272
        %v1274 = vmul.f32 %v1253, 1.442695
        %v1275 = vpow.pop %v1274
        %v1276 = vmul.f32 %v1254, 1.442695
        %v1277 = vpow.pop %v1276
        %v1278 = vmul.f32 %v1255, 1.442695
        %v1279 = vpow.pop %v1278
        %v1280 = vmul.f32 %v1256, 1.442695
        %v1281 = vpow.pop %v1280
        %v1282 = vmul.f32 %v1257, 1.442695
        %v1283 = vpow.pop %v1282
        %v1284 = vmul.f32 %v1258, 1.442695
        %v1285 = vpow.pop %v1284
        %v1286 = vmul.f32 %v1259, 1.442695
        %v1287 = vpow.pop %v1286
        %v1288 = vmul.f32 %v1260, 1.442695
        %v1289 = vpow.pop %v1288
        %v1290 = vmul.f32 %v1261, 1.442695
        %v1291 = vpow.pop %v1290
        %v1292 = vmul.f32 %v1262, 1.442695
        %v1293 = vpow.pop %v1292
        %v1294 = vmul.f32 %v1263, 1.442695
        %v1295 = vpow.pop %v1294
        %v1296 = vld [vmem:[%s435] sm:$0xff]
        %v1297 = vld [vmem:[%s435 + $0x8] sm:$0xff]
        %v1298 = vld [vmem:[%s435 + $0x10] sm:$0xff]
        %v1299 = vld [vmem:[%s435 + $0x18] sm:$0xff]
        %v1300 = vld [vmem:[%s435 + $0x20] sm:$0xff]
        %v1301 = vld [vmem:[%s435 + $0x28] sm:$0xff]
        %v1302 = vld [vmem:[%s435 + $0x30] sm:$0xff]
        %v1303 = vld [vmem:[%s435 + $0x38] sm:$0xff]
        %v1304 = vld [vmem:[%s435 + $0x40] sm:$0xff]
        %v1305 = vld [vmem:[%s435 + $0x48] sm:$0xff]
        %v1306 = vld [vmem:[%s435 + $0x50] sm:$0xff]
        %v1307 = vld [vmem:[%s435 + $0x58] sm:$0xff]
        %v1308 = vld [vmem:[%s435 + $0x60] sm:$0xff]
        %v1309 = vld [vmem:[%s435 + $0x68] sm:$0xff]
        %v1310 = vld [vmem:[%s435 + $0x70] sm:$0xff]
        %v1311 = vld [vmem:[%s435 + $0x78] sm:$0xff]
        %v1312 = vsub.f32 %v1296, %v1087
        %v1313 = vsub.f32 %v1297, %v1090
        %v1314 = vsub.f32 %v1298, %v1093
        %v1315 = vsub.f32 %v1299, %v1096
        %v1316 = vsub.f32 %v1300, %v1099
        %v1317 = vsub.f32 %v1301, %v1102
        %v1318 = vsub.f32 %v1302, %v1105
        %v1319 = vsub.f32 %v1303, %v1108
        %v1320 = vsub.f32 %v1304, %v1111
        %v1321 = vsub.f32 %v1305, %v1114
        %v1322 = vsub.f32 %v1306, %v1117
        %v1323 = vsub.f32 %v1307, %v1120
        %v1324 = vsub.f32 %v1308, %v1123
        %v1325 = vsub.f32 %v1309, %v1126
        %v1326 = vsub.f32 %v1310, %v1129
        %v1327 = vsub.f32 %v1311, %v1132
        %1344 = vrot.lane.b32.xlu0 %v1265, 124
        %v1345 = vpop.permute.xlu0 %1344
        %1346 = vrot.lane.b32.xlu0 %v1267, 124
        %v1347 = vpop.permute.xlu0 %1346
        %1348 = vrot.lane.b32.xlu0 %v1269, 124
        %v1349 = vpop.permute.xlu0 %1348
        %1350 = vrot.lane.b32.xlu0 %v1271, 124
        %v1351 = vpop.permute.xlu0 %1350
        %1352 = vrot.lane.b32.xlu0 %v1273, 124
        %v1353 = vpop.permute.xlu0 %1352
        %1354 = vrot.lane.b32.xlu0 %v1275, 124
        %v1355 = vpop.permute.xlu0 %1354
        %1356 = vrot.lane.b32.xlu0 %v1277, 124
        %v1357 = vpop.permute.xlu0 %1356
        %1358 = vrot.lane.b32.xlu0 %v1279, 124
        %v1359 = vpop.permute.xlu0 %1358
        %1360 = vrot.lane.b32.xlu0 %v1281, 124
        %v1361 = vpop.permute.xlu0 %1360
        %1362 = vrot.lane.b32.xlu0 %v1283, 124
        %v1363 = vpop.permute.xlu0 %1362
        %1364 = vrot.lane.b32.xlu0 %v1285, 124
        %v1365 = vpop.permute.xlu0 %1364
        %1366 = vrot.lane.b32.xlu0 %v1287, 124
        %v1367 = vpop.permute.xlu0 %1366
        %1368 = vrot.lane.b32.xlu0 %v1289, 124
        %v1369 = vpop.permute.xlu0 %1368
        %1370 = vrot.lane.b32.xlu0 %v1291, 124
        %v1371 = vpop.permute.xlu0 %1370
        %1372 = vrot.lane.b32.xlu0 %v1293, 124
        %v1373 = vpop.permute.xlu0 %1372
        %1374 = vrot.lane.b32.xlu0 %v1295, 124
        %v1375 = vpop.permute.xlu0 %1374
        %v1392 = vmul.f32 %v1312, %v1345
        %v1393 = vmul.f32 %v1313, %v1347
        %v1394 = vmul.f32 %v1314, %v1349
        %v1395 = vmul.f32 %v1315, %v1351
        %v1396 = vmul.f32 %v1316, %v1353
        %v1397 = vmul.f32 %v1317, %v1355
        %v1398 = vmul.f32 %v1318, %v1357
        %v1399 = vmul.f32 %v1319, %v1359
        %v1400 = vmul.f32 %v1320, %v1361
        %v1401 = vmul.f32 %v1321, %v1363
        %v1402 = vmul.f32 %v1322, %v1365
        %v1403 = vmul.f32 %v1323, %v1367
        %v1404 = vmul.f32 %v1324, %v1369
        %v1405 = vmul.f32 %v1325, %v1371
        %v1406 = vmul.f32 %v1326, %v1373
        %v1407 = vmul.f32 %v1327, %v1375
        %v1408 = vmul.f32 %v1392, -0.5
        %v1409 = vmul.f32 %v1393, -0.5
        %v1410 = vmul.f32 %v1394, -0.5
        %v1411 = vmul.f32 %v1395, -0.5
        %v1412 = vmul.f32 %v1396, -0.5
        %v1413 = vmul.f32 %v1397, -0.5
        %v1414 = vmul.f32 %v1398, -0.5
        %v1415 = vmul.f32 %v1399, -0.5
        %v1416 = vmul.f32 %v1400, -0.5
        %v1417 = vmul.f32 %v1401, -0.5
        %v1418 = vmul.f32 %v1402, -0.5
        %v1419 = vmul.f32 %v1403, -0.5
        %v1420 = vmul.f32 %v1404, -0.5
        %v1421 = vmul.f32 %v1405, -0.5
        %v1422 = vmul.f32 %v1406, -0.5
        %v1423 = vmul.f32 %v1407, -0.5
        %v1424 = vmul.f32 %v1408, %v1392
        %v1425 = vmul.f32 %v1409, %v1393
        %v1426 = vmul.f32 %v1410, %v1394
        %v1427 = vmul.f32 %v1411, %v1395
        %v1428 = vmul.f32 %v1412, %v1396
        %v1429 = vmul.f32 %v1413, %v1397
        %v1430 = vmul.f32 %v1414, %v1398
        %v1431 = vmul.f32 %v1415, %v1399
        %v1432 = vmul.f32 %v1416, %v1400
        %v1433 = vmul.f32 %v1417, %v1401
        %v1434 = vmul.f32 %v1418, %v1402
        %v1435 = vmul.f32 %v1419, %v1403
        %v1436 = vmul.f32 %v1420, %v1404
        %v1437 = vmul.f32 %v1421, %v1405
        %v1438 = vmul.f32 %v1422, %v1406
        %v1439 = vmul.f32 %v1423, %v1407
        %1456 = vrot.lane.b32.xlu0 %v1232, 124
        %v1457 = vpop.permute.xlu0 %1456
        %1458 = vrot.lane.b32.xlu0 %v1233, 124
        %v1459 = vpop.permute.xlu0 %1458
        %1460 = vrot.lane.b32.xlu0 %v1234, 124
        %v1461 = vpop.permute.xlu0 %1460
        %1462 = vrot.lane.b32.xlu0 %v1235, 124
        %v1463 = vpop.permute.xlu0 %1462
        %1464 = vrot.lane.b32.xlu0 %v1236, 124
        %v1465 = vpop.permute.xlu0 %1464
        %1466 = vrot.lane.b32.xlu0 %v1237, 124
        %v1467 = vpop.permute.xlu0 %1466
        %1468 = vrot.lane.b32.xlu0 %v1238, 124
        %v1469 = vpop.permute.xlu0 %1468
        %1470 = vrot.lane.b32.xlu0 %v1239, 124
        %v1471 = vpop.permute.xlu0 %1470
        %1472 = vrot.lane.b32.xlu0 %v1240, 124
        %v1473 = vpop.permute.xlu0 %1472
        %1474 = vrot.lane.b32.xlu0 %v1241, 124
        %v1475 = vpop.permute.xlu0 %1474
        %1476 = vrot.lane.b32.xlu0 %v1242, 124
        %v1477 = vpop.permute.xlu0 %1476
        %1478 = vrot.lane.b32.xlu0 %v1243, 124
        %v1479 = vpop.permute.xlu0 %1478
        %1480 = vrot.lane.b32.xlu0 %v1244, 124
        %v1481 = vpop.permute.xlu0 %1480
        %1482 = vrot.lane.b32.xlu0 %v1245, 124
        %v1483 = vpop.permute.xlu0 %1482
        %1484 = vrot.lane.b32.xlu0 %v1246, 124
        %v1485 = vpop.permute.xlu0 %1484
        %1486 = vrot.lane.b32.xlu0 %v1247, 124
        %v1487 = vpop.permute.xlu0 %1486
        %v1504 = vsub.f32 %v1424, %v1457
        %v1505 = vsub.f32 %v1425, %v1459
        %v1506 = vsub.f32 %v1426, %v1461
        %v1507 = vsub.f32 %v1427, %v1463
        %v1508 = vsub.f32 %v1428, %v1465
        %v1509 = vsub.f32 %v1429, %v1467
        %v1510 = vsub.f32 %v1430, %v1469
        %v1511 = vsub.f32 %v1431, %v1471
        %v1512 = vsub.f32 %v1432, %v1473
        %v1513 = vsub.f32 %v1433, %v1475
        %v1514 = vsub.f32 %v1434, %v1477
        %v1515 = vsub.f32 %v1435, %v1479
        %v1516 = vsub.f32 %v1436, %v1481
        %v1517 = vsub.f32 %v1437, %v1483
        %v1518 = vsub.f32 %v1438, %v1485
        %v1519 = vsub.f32 %v1439, %v1487
        %v1520 = vsub.f32 %v1504, 0.9189385
        %v1521 = vsub.f32 %v1505, 0.9189385
        %v1522 = vsub.f32 %v1506, 0.9189385
        %v1523 = vsub.f32 %v1507, 0.9189385
        %v1524 = vsub.f32 %v1508, 0.9189385
        %v1525 = vsub.f32 %v1509, 0.9189385
        %v1526 = vsub.f32 %v1510, 0.9189385
        %v1527 = vsub.f32 %v1511, 0.9189385
        %v1528 = vsub.f32 %v1512, 0.9189385
        %v1529 = vsub.f32 %v1513, 0.9189385
        %v1530 = vsub.f32 %v1514, 0.9189385
        %v1531 = vsub.f32 %v1515, 0.9189385
        %v1532 = vsub.f32 %v1516, 0.9189385
        %v1533 = vsub.f32 %v1517, 0.9189385
        %v1534 = vsub.f32 %v1518, 0.9189385
        %v1535 = vsub.f32 %v1519, 0.9189385
        %v1536 = vsel %vm1198, %v1520, 0.0
        %1537 = vadd.xlane.f32.xlu0 %v1536
        %v1538 = vpop.xlane.xlu0 %1537
        %v1539 = vsel %vm1198, %v1521, 0.0
        %1540 = vadd.xlane.f32.xlu0 %v1539
        %v1541 = vpop.xlane.xlu0 %1540
        %v1542 = vsel %vm1198, %v1522, 0.0
        %1543 = vadd.xlane.f32.xlu0 %v1542
        %v1544 = vpop.xlane.xlu0 %1543
        %v1545 = vsel %vm1198, %v1523, 0.0
        %1546 = vadd.xlane.f32.xlu0 %v1545
        %v1547 = vpop.xlane.xlu0 %1546
        %v1548 = vsel %vm1198, %v1524, 0.0
        %1549 = vadd.xlane.f32.xlu0 %v1548
        %v1550 = vpop.xlane.xlu0 %1549
        %v1551 = vsel %vm1198, %v1525, 0.0
        %1552 = vadd.xlane.f32.xlu0 %v1551
        %v1553 = vpop.xlane.xlu0 %1552
        %v1554 = vsel %vm1198, %v1526, 0.0
        %1555 = vadd.xlane.f32.xlu0 %v1554
        %v1556 = vpop.xlane.xlu0 %1555
        %v1557 = vsel %vm1198, %v1527, 0.0
        %1558 = vadd.xlane.f32.xlu0 %v1557
        %v1559 = vpop.xlane.xlu0 %1558
        %v1560 = vsel %vm1198, %v1528, 0.0
        %1561 = vadd.xlane.f32.xlu0 %v1560
        %v1562 = vpop.xlane.xlu0 %1561
        %v1563 = vsel %vm1198, %v1529, 0.0
        %1564 = vadd.xlane.f32.xlu0 %v1563
        %v1565 = vpop.xlane.xlu0 %1564
        %v1566 = vsel %vm1198, %v1530, 0.0
        %1567 = vadd.xlane.f32.xlu0 %v1566
        %v1568 = vpop.xlane.xlu0 %1567
        %v1569 = vsel %vm1198, %v1531, 0.0
        %1570 = vadd.xlane.f32.xlu0 %v1569
        %v1571 = vpop.xlane.xlu0 %1570
        %v1572 = vsel %vm1198, %v1532, 0.0
        %1573 = vadd.xlane.f32.xlu0 %v1572
        %v1574 = vpop.xlane.xlu0 %1573
        %v1575 = vsel %vm1198, %v1533, 0.0
        %1576 = vadd.xlane.f32.xlu0 %v1575
        %v1577 = vpop.xlane.xlu0 %1576
        %v1578 = vsel %vm1198, %v1534, 0.0
        %1579 = vadd.xlane.f32.xlu0 %v1578
        %v1580 = vpop.xlane.xlu0 %1579
        %v1581 = vsel %vm1198, %v1535, 0.0
        %1582 = vadd.xlane.f32.xlu0 %v1581
        %v1583 = vpop.xlane.xlu0 %1582
        %v1584 = vld [vmem:[%s447] sm:$0xff]
        %v1585 = vld [vmem:[%s447 + $0x8] sm:$0xff]
        %v1586 = vld [vmem:[%s447 + $0x10] sm:$0xff]
        %v1587 = vld [vmem:[%s447 + $0x18] sm:$0xff]
        %v1588 = vld [vmem:[%s447 + $0x20] sm:$0xff]
        %v1589 = vld [vmem:[%s447 + $0x28] sm:$0xff]
        %v1590 = vld [vmem:[%s447 + $0x30] sm:$0xff]
        %v1591 = vld [vmem:[%s447 + $0x38] sm:$0xff]
        %v1592 = vld [vmem:[%s447 + $0x40] sm:$0xff]
        %v1593 = vld [vmem:[%s447 + $0x48] sm:$0xff]
        %v1594 = vld [vmem:[%s447 + $0x50] sm:$0xff]
        %v1595 = vld [vmem:[%s447 + $0x58] sm:$0xff]
        %v1596 = vld [vmem:[%s447 + $0x60] sm:$0xff]
        %v1597 = vld [vmem:[%s447 + $0x68] sm:$0xff]
        %v1598 = vld [vmem:[%s447 + $0x70] sm:$0xff]
        %v1599 = vld [vmem:[%s447 + $0x78] sm:$0xff]
        %v1600 = vld [vmem:[%s441] sm:$0xff]
        %v1601 = vld [vmem:[%s441 + $0x8] sm:$0xff]
        %v1602 = vld [vmem:[%s441 + $0x10] sm:$0xff]
        %v1603 = vld [vmem:[%s441 + $0x18] sm:$0xff]
        %v1604 = vld [vmem:[%s441 + $0x20] sm:$0xff]
        %v1605 = vld [vmem:[%s441 + $0x28] sm:$0xff]
        %v1606 = vld [vmem:[%s441 + $0x30] sm:$0xff]
        %v1607 = vld [vmem:[%s441 + $0x38] sm:$0xff]
        %v1608 = vld [vmem:[%s441 + $0x40] sm:$0xff]
        %v1609 = vld [vmem:[%s441 + $0x48] sm:$0xff]
        %v1610 = vld [vmem:[%s441 + $0x50] sm:$0xff]
        %v1611 = vld [vmem:[%s441 + $0x58] sm:$0xff]
        %v1612 = vld [vmem:[%s441 + $0x60] sm:$0xff]
        %v1613 = vld [vmem:[%s441 + $0x68] sm:$0xff]
        %v1614 = vld [vmem:[%s441 + $0x70] sm:$0xff]
        %v1615 = vld [vmem:[%s441 + $0x78] sm:$0xff]
        %v1616 = vsub.f32 %v1538, %v1600
        %v1617 = vsub.f32 %v1541, %v1601
        %v1618 = vsub.f32 %v1544, %v1602
        %v1619 = vsub.f32 %v1547, %v1603
        %v1620 = vsub.f32 %v1550, %v1604
        %v1621 = vsub.f32 %v1553, %v1605
        %v1622 = vsub.f32 %v1556, %v1606
        %v1623 = vsub.f32 %v1559, %v1607
        %v1624 = vsub.f32 %v1562, %v1608
        %v1625 = vsub.f32 %v1565, %v1609
        %v1626 = vsub.f32 %v1568, %v1610
        %v1627 = vsub.f32 %v1571, %v1611
        %v1628 = vsub.f32 %v1574, %v1612
        %v1629 = vsub.f32 %v1577, %v1613
        %v1630 = vsub.f32 %v1580, %v1614
        %v1631 = vsub.f32 %v1583, %v1615
        %v1632 = vmul.f32 %v1616, 1.442695
        %v1633 = vpow.pop %v1632
        %v1634 = vmul.f32 %v1617, 1.442695
        %v1635 = vpow.pop %v1634
        %v1636 = vmul.f32 %v1618, 1.442695
        %v1637 = vpow.pop %v1636
        %v1638 = vmul.f32 %v1619, 1.442695
        %v1639 = vpow.pop %v1638
        %v1640 = vmul.f32 %v1620, 1.442695
        %v1641 = vpow.pop %v1640
        %v1642 = vmul.f32 %v1621, 1.442695
        %v1643 = vpow.pop %v1642
        %v1644 = vmul.f32 %v1622, 1.442695
        %v1645 = vpow.pop %v1644
        %v1646 = vmul.f32 %v1623, 1.442695
        %v1647 = vpow.pop %v1646
        %v1648 = vmul.f32 %v1624, 1.442695
        %v1649 = vpow.pop %v1648
        %v1650 = vmul.f32 %v1625, 1.442695
        %v1651 = vpow.pop %v1650
        %v1652 = vmul.f32 %v1626, 1.442695
        %v1653 = vpow.pop %v1652
        %v1654 = vmul.f32 %v1627, 1.442695
        %v1655 = vpow.pop %v1654
        %v1656 = vmul.f32 %v1628, 1.442695
        %v1657 = vpow.pop %v1656
        %v1658 = vmul.f32 %v1629, 1.442695
        %v1659 = vpow.pop %v1658
        %v1660 = vmul.f32 %v1630, 1.442695
        %v1661 = vpow.pop %v1660
        %v1662 = vmul.f32 %v1631, 1.442695
        %v1663 = vpow.pop %v1662
        %v1664 = vmax.f32 %v1633, 0.8
        %v1665 = vmax.f32 %v1635, 0.8
        %v1666 = vmax.f32 %v1637, 0.8
        %v1667 = vmax.f32 %v1639, 0.8
        %v1668 = vmax.f32 %v1641, 0.8
        %v1669 = vmax.f32 %v1643, 0.8
        %v1670 = vmax.f32 %v1645, 0.8
        %v1671 = vmax.f32 %v1647, 0.8
        %v1672 = vmax.f32 %v1649, 0.8
        %v1673 = vmax.f32 %v1651, 0.8
        %v1674 = vmax.f32 %v1653, 0.8
        %v1675 = vmax.f32 %v1655, 0.8
        %v1676 = vmax.f32 %v1657, 0.8
        %v1677 = vmax.f32 %v1659, 0.8
        %v1678 = vmax.f32 %v1661, 0.8
        %v1679 = vmax.f32 %v1663, 0.8
        %v1680 = vmin.f32 %v1664, 1.2
        %v1681 = vmin.f32 %v1665, 1.2
        %v1682 = vmin.f32 %v1666, 1.2
        %v1683 = vmin.f32 %v1667, 1.2
        %v1684 = vmin.f32 %v1668, 1.2
        %v1685 = vmin.f32 %v1669, 1.2
        %v1686 = vmin.f32 %v1670, 1.2
        %v1687 = vmin.f32 %v1671, 1.2
        %v1688 = vmin.f32 %v1672, 1.2
        %v1689 = vmin.f32 %v1673, 1.2
        %v1690 = vmin.f32 %v1674, 1.2
        %v1691 = vmin.f32 %v1675, 1.2
        %v1692 = vmin.f32 %v1676, 1.2
        %v1693 = vmin.f32 %v1677, 1.2
        %v1694 = vmin.f32 %v1678, 1.2
        %v1695 = vmin.f32 %v1679, 1.2
        %v1696 = vmul.f32 %v1633, %v1584
        %v1697 = vmul.f32 %v1635, %v1585
        %v1698 = vmul.f32 %v1637, %v1586
        %v1699 = vmul.f32 %v1639, %v1587
        %v1700 = vmul.f32 %v1641, %v1588
        %v1701 = vmul.f32 %v1643, %v1589
        %v1702 = vmul.f32 %v1645, %v1590
        %v1703 = vmul.f32 %v1647, %v1591
        %v1704 = vmul.f32 %v1649, %v1592
        %v1705 = vmul.f32 %v1651, %v1593
        %v1706 = vmul.f32 %v1653, %v1594
        %v1707 = vmul.f32 %v1655, %v1595
        %v1708 = vmul.f32 %v1657, %v1596
        %v1709 = vmul.f32 %v1659, %v1597
        %v1710 = vmul.f32 %v1661, %v1598
        %v1711 = vmul.f32 %v1663, %v1599
        %v1712 = vmul.f32 %v1680, %v1584
        %v1713 = vmul.f32 %v1681, %v1585
        %v1714 = vmul.f32 %v1682, %v1586
        %v1715 = vmul.f32 %v1683, %v1587
        %v1716 = vmul.f32 %v1684, %v1588
        %v1717 = vmul.f32 %v1685, %v1589
        %v1718 = vmul.f32 %v1686, %v1590
        %v1719 = vmul.f32 %v1687, %v1591
        %v1720 = vmul.f32 %v1688, %v1592
        %v1721 = vmul.f32 %v1689, %v1593
        %v1722 = vmul.f32 %v1690, %v1594
        %v1723 = vmul.f32 %v1691, %v1595
        %v1724 = vmul.f32 %v1692, %v1596
        %v1725 = vmul.f32 %v1693, %v1597
        %v1726 = vmul.f32 %v1694, %v1598
        %v1727 = vmul.f32 %v1695, %v1599
        %v1728 = vmin.f32 %v1696, %v1712
        %v1729 = vmin.f32 %v1697, %v1713
        %v1730 = vmin.f32 %v1698, %v1714
        %v1731 = vmin.f32 %v1699, %v1715
        %v1732 = vmin.f32 %v1700, %v1716
        %v1733 = vmin.f32 %v1701, %v1717
        %v1734 = vmin.f32 %v1702, %v1718
        %v1735 = vmin.f32 %v1703, %v1719
        %v1736 = vmin.f32 %v1704, %v1720
        %v1737 = vmin.f32 %v1705, %v1721
        %v1738 = vmin.f32 %v1706, %v1722
        %v1739 = vmin.f32 %v1707, %v1723
        %v1740 = vmin.f32 %v1708, %v1724
        %v1741 = vmin.f32 %v1709, %v1725
        %v1742 = vmin.f32 %v1710, %v1726
        %v1743 = vmin.f32 %v1711, %v1727
        %v1744 = vld [vmem:[#allocation2] sm:$0x1]
        %vm1745 = vcmask 7168
        %v1746 = vsel %vm1745, %v1728, 0.0
        %v1747 = vsel %vm1745, %v1729, 0.0
        %v1748 = vadd.f32 %v1746, %v1747
        %v1749 = vsel %vm1745, %v1730, 0.0
        %v1750 = vadd.f32 %v1748, %v1749
        %v1751 = vsel %vm1745, %v1731, 0.0
        %v1752 = vadd.f32 %v1750, %v1751
        %v1753 = vsel %vm1745, %v1732, 0.0
        %v1754 = vadd.f32 %v1752, %v1753
        %v1755 = vsel %vm1745, %v1733, 0.0
        %v1756 = vadd.f32 %v1754, %v1755
        %v1757 = vsel %vm1745, %v1734, 0.0
        %v1758 = vadd.f32 %v1756, %v1757
        %v1759 = vsel %vm1745, %v1735, 0.0
        %v1760 = vadd.f32 %v1758, %v1759
        %v1761 = vsel %vm1745, %v1736, 0.0
        %v1762 = vadd.f32 %v1760, %v1761
        %v1763 = vsel %vm1745, %v1737, 0.0
        %v1764 = vadd.f32 %v1762, %v1763
        %v1765 = vsel %vm1745, %v1738, 0.0
        %v1766 = vadd.f32 %v1764, %v1765
        %v1767 = vsel %vm1745, %v1739, 0.0
        %v1768 = vadd.f32 %v1766, %v1767
        %v1769 = vsel %vm1745, %v1740, 0.0
        %v1770 = vadd.f32 %v1768, %v1769
        %v1771 = vsel %vm1745, %v1741, 0.0
        %v1772 = vadd.f32 %v1770, %v1771
        %v1773 = vsel %vm1745, %v1742, 0.0
        %v1774 = vadd.f32 %v1772, %v1773
        %v1775 = vsel %vm1745, %v1743, 0.0
        %v1776 = vadd.f32 %v1774, %v1775
        %1777 = vadd.xlane.f32.xlu0 %v1776
        %v1778 = vpop.xlane.xlu0 %1777
        %v1779 = vrot.slane %v1778, 4
        %v1780 = vadd.f32 %v1778, %v1779
        %v1781 = vrot.slane %v1780, 2
        %v1782 = vadd.f32 %v1780, %v1781
        %v1783 = vrot.slane %v1782, 1
        %v1784 = vadd.f32 %v1782, %v1783
        %s1785 = vtos %v1784
        %v1786 = vstv %s1785
        %v1787 = vadd.f32 %v1744, %v1786
        %vm1788 = vcmask 0
        %1789 = vst.msk [vmem:[#allocation2] sm:$0x1] %vm1788, %v1787
        %p1790 = scmp.eq.s32.totalorder %s24, 1
        // Predicated region
        $region65: #{tpu_custom_call.1} parent=59 // pred_check
          %p1791 = pneg %p1790
        $region66: #{tpu_custom_call.1} parent=59 // pred_check_branch
          %1793 = sbr.rel (%p1791) target = $region68
        $region67: #{tpu_custom_call.1} parent=59 // pred_region
          %v1794 = vld [vmem:[#allocation2] sm:$0x1]
          %v1795 = vmul.f32 %v1794, -0.00390625
          %1796 = vst.msk [vmem:[#allocation2] sm:$0x1] %vm1788, %v1795
        $region68: #{tpu_custom_call.1} parent=59 // pred_fallthru
          _
        %s1797 = smul.u32 16, %s24
        %p1798 = scmp.lt.s32.totalorder %s1797, 31
        %s1799 = scalar_select %p1798, %s1797, 31
        %s1800 = smul.addr %s1799, 8
        %s1801 = scalar_lea.vmem %s10, %s1800
        // Predicated region
        $region69: #{tpu_custom_call.1} parent=59 // pred_check
          %p1802 = pneg %p272
        $region70: #{tpu_custom_call.1} parent=59 // pred_check_branch
          %1804 = sbr.rel (%p1802) target = $region72
        $region71: #{tpu_custom_call.1} parent=59 // pred_region
          %s1805 = smul.u32 16, %s24
        $region72: #{tpu_custom_call.1} parent=59 // pred_fallthru
          _
        // Predicated region
        $region73: #{tpu_custom_call.1} parent=59 // pred_check
          %p1806 = pneg %p293
        $region74: #{tpu_custom_call.1} parent=59 // pred_check_branch
          %1808 = sbr.rel (%p1806) target = $region76
        $region75: #{tpu_custom_call.1} parent=59 // pred_region
          %1810 = vsyncadd [#allocation3], 0
          %s1812 = sshll.u32 [#allocation2], 4
          %s1813 = int_to_ptr.vmem [resolvable:$true] %s1812
          %s1814 = sshll.u32 %s11, 4
          %s1815 = int_to_ptr.hbm [resolvable:$true] %s1814
          %1817 = dma.vmem_to_hbm [thread:$0]  %s1813, 16, %s1815, [#allocation3]
        $region76: #{tpu_custom_call.1} parent=59 // pred_fallthru
          _
        // Predicated region
        $region77: #{tpu_custom_call.1} parent=59 // pred_check
          %p1818 = pneg %p293
        $region78: #{tpu_custom_call.1} parent=59 // pred_check_branch
          %1820 = sbr.rel (%p1818) target = $region80
        $region79: #{tpu_custom_call.1} parent=59 // pred_region
          %1822 = dma.done [#allocation3], 16
        $region80: #{tpu_custom_call.1} parent=59 // pred_fallthru
          _
      $region60: #{tpu_custom_call.1} parent=5 // pred_fallthru
        _
      %p1823 = scmp.le.s32.totalorder 2, %s19
      // Predicated region
      $region81: #{tpu_custom_call.1} parent=5 // pred_check
        %p1824 = pneg %p1823
      $region82: #{tpu_custom_call.1} parent=5 // pred_check_branch
        %1826 = sbr.rel (%p1824) target = $region84
      $region83: #{tpu_custom_call.1} parent=5 // pred_region
        %s1827 = ssub.s32 %s19, 2
        // Predicated region
        $region85: #{tpu_custom_call.1} parent=83 // pred_check
          %p1828 = pneg %p278
        $region86: #{tpu_custom_call.1} parent=83 // pred_check_branch
          %1830 = sbr.rel (%p1828) target = $region88
        $region87: #{tpu_custom_call.1} parent=83 // pred_region
          %s1831 = smul.u32 16, %s25
          %p1832 = scmp.lt.s32.totalorder %s1831, 31
          %s1833 = scalar_select %p1832, %s1831, 31
          %s1834 = smul.addr %s1833, 8
          %s1835 = scalar_lea.vmem %s10, %s1834
        $region88: #{tpu_custom_call.1} parent=83 // pred_fallthru
          _
      $region84: #{tpu_custom_call.1} parent=5 // pred_fallthru
        _
    $region6: #{tpu_custom_call.1} parent=1 // loop_footer
      %s23 = sadd.s32 1, %s19
    $region7: #{tpu_custom_call.1} parent=1 // loop_footer_branch
      %18 = sbr.rel target = $region3
    $region8: #{tpu_custom_call.1} parent=1 // loop_exit
      _
    %1836 = vsyncpa [#allocation3], 1
    %s1837 = scalar_lea.sflag [#allocation3], 1
    %1838 = vsyncpa %s1837, 1

</llo_original>
